<compile_context>
chip_gen: v6e
topology: v6e:2x2x1
jax: 0.10.0
libtpu: 0.0.40
codegen_flags: <defaults>
</compile_context>

<pallas_src>
import jax
import jax.numpy as jnp
from jax import lax
from jax.experimental import pallas as pl
from jax.experimental.pallas import tpu as pltpu

N_EMBD = 64
BLOCK_SIZE = 32           # max context length of the module (mask buffer size)
NUM_HEADS = 4
HEAD_SIZE = N_EMBD // NUM_HEADS
DROPOUT = 0.0             # p=0.0 -> identity; no masking / PRNG needed


def mha_kernel(x_ref, wq_ref, wk_ref, wv_ref, wp_ref, bp_ref, o_ref):
    # x_ref: (1, T, C); wq/wk/wv/wp: (C, C) stored (in, out); bp: (1, C); o_ref: (1, T, C)
    x = x_ref[0]                                   # (T, C), native dtype
    T = x.shape[0]

    # Fused QKV projections for all heads (single MXU pass each).
    q = jnp.dot(x, wq_ref[...], preferred_element_type=jnp.float32)   # (T, C) f32
    k = jnp.dot(x, wk_ref[...], preferred_element_type=jnp.float32)
    v = jnp.dot(x, wv_ref[...], preferred_element_type=jnp.float32)

    # NOTE: reference scales by n_embd**-0.5 (not head_size**-0.5) — match it exactly.
    scale = jnp.float32(N_EMBD ** -0.5)

    # Causal mask (row >= col), shared across heads.
    row = lax.broadcasted_iota(jnp.int32, (T, T), 0)
    col = lax.broadcasted_iota(jnp.int32, (T, T), 1)
    causal = row >= col

    head_outs = []
    for h in range(NUM_HEADS):                     # static loop, NUM_HEADS=4
        lo = h * HEAD_SIZE
        hi = lo + HEAD_SIZE
        qh = q[:, lo:hi]                           # (T, D)
        kh = k[:, lo:hi]
        vh = v[:, lo:hi]

        # wei = qh @ kh^T  (contract last dims; no explicit transpose needed)
        wei = lax.dot_general(qh, kh, (((1,), (1,)), ((), ())),
                              preferred_element_type=jnp.float32) * scale   # (T, T)
        wei = jnp.where(causal, wei, -jnp.inf)

        # Numerically stable softmax over the key axis.
        wei = wei - jnp.max(wei, axis=-1, keepdims=True)
        p = jnp.exp(wei)
        p = p / jnp.sum(p, axis=-1, keepdims=True)
        # Dropout(p=0.0) on attention weights is the identity.

        head_outs.append(jnp.dot(p, vh, preferred_element_type=jnp.float32))  # (T, D)

    heads = jnp.concatenate(head_outs, axis=-1)    # (T, C) — concat in head order

    # Output projection: Linear(n_embd, n_embd) with bias, then Dropout(p=0.0) = identity.
    y = jnp.dot(heads.astype(wp_ref.dtype), wp_ref[...],
                preferred_element_type=jnp.float32) + bp_ref[...]
    o_ref[0] = y.astype(o_ref.dtype)


def multi_head_attention(x, wq, wk, wv, wproj, bproj):
    """x: (B, T, C). Weights stored transposed vs. PyTorch Linear, i.e. (in, out).
    wq/wk/wv: packed per-head projections (C, C); wproj: (C, C); bproj: (C,)."""
    B, T, C = x.shape
    assert C == N_EMBD and T <= BLOCK_SIZE
    bproj2d = bproj.reshape(1, C)

    bytes_per = jnp.dtype(x.dtype).itemsize
    flops = (2 * B * T * C * C * 4                              # q,k,v,proj matmuls
             + 2 * B * NUM_HEADS * T * T * HEAD_SIZE * 2)       # qk^T and p@v
    bytes_accessed = (x.size + 4 * C * C + C + B * T * C) * bytes_per

    out = pl.pallas_call(
        mha_kernel,
        out_shape=jax.ShapeDtypeStruct((B, T, C), x.dtype),
        grid_spec=pltpu.PrefetchScalarGridSpec(
            num_scalar_prefetch=0,
            grid=(B,),                                         # >=2 parallel steps -> both v7x TCs
            in_specs=[
                pl.BlockSpec((1, T, C), lambda b: (b, 0, 0)),  # x slab for batch b
                pl.BlockSpec((C, C), lambda b: (0, 0)),        # Wq (resident, constant index)
                pl.BlockSpec((C, C), lambda b: (0, 0)),        # Wk
                pl.BlockSpec((C, C), lambda b: (0, 0)),        # Wv
                pl.BlockSpec((C, C), lambda b: (0, 0)),        # Wproj
                pl.BlockSpec((1, C), lambda b: (0, 0)),        # bproj
            ],
            out_specs=pl.BlockSpec((1, T, C), lambda b: (b, 0, 0)),
        ),
        compiler_params=pltpu.CompilerParams(
            dimension_semantics=("parallel",)),
        cost_estimate=pl.CostEstimate(
            flops=flops,
            transcendentals=B * NUM_HEADS * T * T,             # exp in softmax
            bytes_accessed=bytes_accessed),
    )(x, wq, wk, wv, wproj, bproj2d)
    return out


def reference(x, wq, wk, wv, wproj, bproj):
    """Pure-JAX mirror of the PyTorch MultiHeadAttention forward."""
    B, T, C = x.shape
    q = x @ wq
    k = x @ wk
    v = x @ wv
    qh = q.reshape(B, T, NUM_HEADS, HEAD_SIZE).transpose(0, 2, 1, 3)
    kh = k.reshape(B, T, NUM_HEADS, HEAD_SIZE).transpose(0, 2, 1, 3)
    vh = v.reshape(B, T, NUM_HEADS, HEAD_SIZE).transpose(0, 2, 1, 3)
    wei = jnp.einsum('bhqd,bhkd->bhqk', qh, kh) * (N_EMBD ** -0.5)
    mask = jnp.tril(jnp.ones((T, T), dtype=bool))
    wei = jnp.where(mask, wei, -jnp.inf)
    wei = jax.nn.softmax(wei, axis=-1)
    out = jnp.einsum('bhqk,bhkd->bhqd', wei, vh)
    out = out.transpose(0, 2, 1, 3).reshape(B, T, C)
    return out @ wproj + bproj


if __name__ == "__main__":
    key = jax.random.PRNGKey(0)
    kx, k1, k2, k3, k4, k5 = jax.random.split(key, 6)

    B, T, C = 2, 8, N_EMBD
    x = jax.random.normal(kx, (B, T, C), dtype=jnp.float32)

    # Deterministic synthetic params (PyTorch Linear-ish scale), stored as (in, out).
    bound = 1.0 / (C ** 0.5)
    wq = jax.random.uniform(k1, (C, C), jnp.float32, -bound, bound)
    wk = jax.random.uniform(k2, (C, C), jnp.float32, -bound, bound)
    wv = jax.random.uniform(k3, (C, C), jnp.float32, -bound, bound)
    wproj = jax.random.uniform(k4, (C, C), jnp.float32, -bound, bound)
    bproj = jax.random.uniform(k5, (C,), jnp.float32, -bound, bound)

    out = multi_head_attention(x, wq, wk, wv, wproj, bproj)
    out = jax.block_until_ready(out)

    ref = reference(x, wq, wk, wv, wproj, bproj)
    assert out.shape == (B, T, C)
    assert jnp.allclose(out, ref, atol=1e-4, rtol=1e-4), "mismatch vs reference"
    print("KERNEL_OK")
</pallas_src>

<mosaic_0001>
module attributes {stable_mosaic.version = 11 : i64} {
  func.func @mha_kernel(%arg0: i32, %arg1: memref<1x8x64xf32, #tpu.memory_space<vmem>>, %arg2: memref<64x64xf32, #tpu.memory_space<vmem>>, %arg3: memref<64x64xf32, #tpu.memory_space<vmem>>, %arg4: memref<64x64xf32, #tpu.memory_space<vmem>>, %arg5: memref<64x64xf32, #tpu.memory_space<vmem>>, %arg6: memref<1x64xf32, #tpu.memory_space<vmem>>, %arg7: memref<1x8x64xf32, #tpu.memory_space<vmem>>) attributes {dimension_semantics = [#tpu.dimension_semantics<parallel>], iteration_bounds = array<i64: 2>, scalar_prefetch = 0 : i64, scratch_operands = 0 : i64, tpu.core_type = #tpu.core_type<tc>, window_params = [{transform_indices = @transform_0, window_bounds = array<i64: 1, 8, 64>}, {pipeline_mode = #tpu.pipeline_mode<synchronous>, transform_indices = @transform_1, window_bounds = array<i64: 64, 64>}, {pipeline_mode = #tpu.pipeline_mode<synchronous>, transform_indices = @transform_2, window_bounds = array<i64: 64, 64>}, {pipeline_mode = #tpu.pipeline_mode<synchronous>, transform_indices = @transform_3, window_bounds = array<i64: 64, 64>}, {pipeline_mode = #tpu.pipeline_mode<synchronous>, transform_indices = @transform_4, window_bounds = array<i64: 64, 64>}, {pipeline_mode = #tpu.pipeline_mode<synchronous>, transform_indices = @transform_5, window_bounds = array<i64: 1, 64>}, {transform_indices = @transform_6, window_bounds = array<i64: 1, 8, 64>}]} {
    %c0 = arith.constant 0 : index
    %c0_0 = arith.constant 0 : index
    %c0_1 = arith.constant 0 : index
    %0 = vector.load %arg1[%c0, %c0_0, %c0_1] : memref<1x8x64xf32, #tpu.memory_space<vmem>>, vector<1x8x64xf32>
    %1 = vector.shape_cast %0 : vector<1x8x64xf32> to vector<8x64xf32>
    %c0_2 = arith.constant 0 : index
    %c0_3 = arith.constant 0 : index
    %2 = vector.load %arg2[%c0_2, %c0_3] : memref<64x64xf32, #tpu.memory_space<vmem>>, vector<64x64xf32>
    %cst = arith.constant dense<0.000000e+00> : vector<8x64xf32>
    %3 = tpu.matmul %1, %2, %cst {dimension_numbers = #tpu.dot_dimension_numbers<[1], [0], [0], [1], [0, 0, 1, 1], [], []>} : vector<8x64xf32>, vector<64x64xf32>, vector<8x64xf32> -> vector<8x64xf32>
    %c0_4 = arith.constant 0 : index
    %c0_5 = arith.constant 0 : index
    %4 = vector.load %arg3[%c0_4, %c0_5] : memref<64x64xf32, #tpu.memory_space<vmem>>, vector<64x64xf32>
    %cst_6 = arith.constant dense<0.000000e+00> : vector<8x64xf32>
    %5 = tpu.matmul %1, %4, %cst_6 {dimension_numbers = #tpu.dot_dimension_numbers<[1], [0], [0], [1], [0, 0, 1, 1], [], []>} : vector<8x64xf32>, vector<64x64xf32>, vector<8x64xf32> -> vector<8x64xf32>
    %c0_7 = arith.constant 0 : index
    %c0_8 = arith.constant 0 : index
    %6 = vector.load %arg4[%c0_7, %c0_8] : memref<64x64xf32, #tpu.memory_space<vmem>>, vector<64x64xf32>
    %cst_9 = arith.constant dense<0.000000e+00> : vector<8x64xf32>
    %7 = tpu.matmul %1, %6, %cst_9 {dimension_numbers = #tpu.dot_dimension_numbers<[1], [0], [0], [1], [0, 0, 1, 1], [], []>} : vector<8x64xf32>, vector<64x64xf32>, vector<8x64xf32> -> vector<8x64xf32>
    %8 = tpu.iota {dimensions = array<i32: 0>} : vector<8x8xi32>
    %9 = tpu.iota {dimensions = array<i32: 1>} : vector<8x8xi32>
    %10 = arith.cmpi sge, %8, %9 : vector<8x8xi32>
    %11 = vector.extract_strided_slice %3 {offsets = [0, 0], sizes = [8, 16], strides = [1, 1]} : vector<8x64xf32> to vector<8x16xf32>
    %12 = vector.extract_strided_slice %5 {offsets = [0, 0], sizes = [8, 16], strides = [1, 1]} : vector<8x64xf32> to vector<8x16xf32>
    %13 = vector.extract_strided_slice %7 {offsets = [0, 0], sizes = [8, 16], strides = [1, 1]} : vector<8x64xf32> to vector<8x16xf32>
    %cst_10 = arith.constant dense<0.000000e+00> : vector<8x8xf32>
    %14 = tpu.matmul %11, %12, %cst_10 {dimension_numbers = #tpu.dot_dimension_numbers<[1], [1], [0], [0], [0, 0, 1, 0], [], []>} : vector<8x16xf32>, vector<8x16xf32>, vector<8x8xf32> -> vector<8x8xf32>
    %cst_11 = arith.constant 1.250000e-01 : f32
    %15 = vector.broadcast %cst_11 : f32 to vector<8x8xf32>
    %16 = arith.mulf %14, %15 : vector<8x8xf32>
    %cst_12 = arith.constant 0xFF800000 : f32
    %17 = vector.broadcast %cst_12 : f32 to vector<8x8xf32>
    %18 = arith.select %10, %16, %17 : vector<8x8xi1>, vector<8x8xf32>
    %cst_13 = arith.constant dense<0xFF800000> : vector<8xf32>
    %19 = vector.multi_reduction <maximumf>, %18, %cst_13 [1] : vector<8x8xf32> to vector<8xf32>
    %20 = vector.shape_cast %19 : vector<8xf32> to vector<8x1xf32>
    %21 = vector.broadcast %20 : vector<8x1xf32> to vector<8x8xf32>
    %22 = arith.subf %18, %21 : vector<8x8xf32>
    %23 = math.exp %22 : vector<8x8xf32>
    %cst_14 = arith.constant dense<0.000000e+00> : vector<8xf32>
    %24 = vector.multi_reduction <add>, %23, %cst_14 [1] : vector<8x8xf32> to vector<8xf32>
    %25 = vector.shape_cast %24 : vector<8xf32> to vector<8x1xf32>
    %26 = vector.broadcast %25 : vector<8x1xf32> to vector<8x8xf32>
    %27 = arith.divf %23, %26 : vector<8x8xf32>
    %cst_15 = arith.constant dense<0.000000e+00> : vector<8x16xf32>
    %28 = tpu.matmul %27, %13, %cst_15 {dimension_numbers = #tpu.dot_dimension_numbers<[1], [0], [0], [1], [0, 0, 1, 1], [], []>} : vector<8x8xf32>, vector<8x16xf32>, vector<8x16xf32> -> vector<8x16xf32>
    %29 = vector.extract_strided_slice %3 {offsets = [0, 16], sizes = [8, 16], strides = [1, 1]} : vector<8x64xf32> to vector<8x16xf32>
    %30 = vector.extract_strided_slice %5 {offsets = [0, 16], sizes = [8, 16], strides = [1, 1]} : vector<8x64xf32> to vector<8x16xf32>
    %31 = vector.extract_strided_slice %7 {offsets = [0, 16], sizes = [8, 16], strides = [1, 1]} : vector<8x64xf32> to vector<8x16xf32>
    %cst_16 = arith.constant dense<0.000000e+00> : vector<8x8xf32>
    %32 = tpu.matmul %29, %30, %cst_16 {dimension_numbers = #tpu.dot_dimension_numbers<[1], [1], [0], [0], [0, 0, 1, 0], [], []>} : vector<8x16xf32>, vector<8x16xf32>, vector<8x8xf32> -> vector<8x8xf32>
    %cst_17 = arith.constant 1.250000e-01 : f32
    %33 = vector.broadcast %cst_17 : f32 to vector<8x8xf32>
    %34 = arith.mulf %32, %33 : vector<8x8xf32>
    %cst_18 = arith.constant 0xFF800000 : f32
    %35 = vector.broadcast %cst_18 : f32 to vector<8x8xf32>
    %36 = arith.select %10, %34, %35 : vector<8x8xi1>, vector<8x8xf32>
    %cst_19 = arith.constant dense<0xFF800000> : vector<8xf32>
    %37 = vector.multi_reduction <maximumf>, %36, %cst_19 [1] : vector<8x8xf32> to vector<8xf32>
    %38 = vector.shape_cast %37 : vector<8xf32> to vector<8x1xf32>
    %39 = vector.broadcast %38 : vector<8x1xf32> to vector<8x8xf32>
    %40 = arith.subf %36, %39 : vector<8x8xf32>
    %41 = math.exp %40 : vector<8x8xf32>
    %cst_20 = arith.constant dense<0.000000e+00> : vector<8xf32>
    %42 = vector.multi_reduction <add>, %41, %cst_20 [1] : vector<8x8xf32> to vector<8xf32>
    %43 = vector.shape_cast %42 : vector<8xf32> to vector<8x1xf32>
    %44 = vector.broadcast %43 : vector<8x1xf32> to vector<8x8xf32>
    %45 = arith.divf %41, %44 : vector<8x8xf32>
    %cst_21 = arith.constant dense<0.000000e+00> : vector<8x16xf32>
    %46 = tpu.matmul %45, %31, %cst_21 {dimension_numbers = #tpu.dot_dimension_numbers<[1], [0], [0], [1], [0, 0, 1, 1], [], []>} : vector<8x8xf32>, vector<8x16xf32>, vector<8x16xf32> -> vector<8x16xf32>
    %47 = vector.extract_strided_slice %3 {offsets = [0, 32], sizes = [8, 16], strides = [1, 1]} : vector<8x64xf32> to vector<8x16xf32>
    %48 = vector.extract_strided_slice %5 {offsets = [0, 32], sizes = [8, 16], strides = [1, 1]} : vector<8x64xf32> to vector<8x16xf32>
    %49 = vector.extract_strided_slice %7 {offsets = [0, 32], sizes = [8, 16], strides = [1, 1]} : vector<8x64xf32> to vector<8x16xf32>
    %cst_22 = arith.constant dense<0.000000e+00> : vector<8x8xf32>
    %50 = tpu.matmul %47, %48, %cst_22 {dimension_numbers = #tpu.dot_dimension_numbers<[1], [1], [0], [0], [0, 0, 1, 0], [], []>} : vector<8x16xf32>, vector<8x16xf32>, vector<8x8xf32> -> vector<8x8xf32>
    %cst_23 = arith.constant 1.250000e-01 : f32
    %51 = vector.broadcast %cst_23 : f32 to vector<8x8xf32>
    %52 = arith.mulf %50, %51 : vector<8x8xf32>
    %cst_24 = arith.constant 0xFF800000 : f32
    %53 = vector.broadcast %cst_24 : f32 to vector<8x8xf32>
    %54 = arith.select %10, %52, %53 : vector<8x8xi1>, vector<8x8xf32>
    %cst_25 = arith.constant dense<0xFF800000> : vector<8xf32>
    %55 = vector.multi_reduction <maximumf>, %54, %cst_25 [1] : vector<8x8xf32> to vector<8xf32>
    %56 = vector.shape_cast %55 : vector<8xf32> to vector<8x1xf32>
    %57 = vector.broadcast %56 : vector<8x1xf32> to vector<8x8xf32>
    %58 = arith.subf %54, %57 : vector<8x8xf32>
    %59 = math.exp %58 : vector<8x8xf32>
    %cst_26 = arith.constant dense<0.000000e+00> : vector<8xf32>
    %60 = vector.multi_reduction <add>, %59, %cst_26 [1] : vector<8x8xf32> to vector<8xf32>
    %61 = vector.shape_cast %60 : vector<8xf32> to vector<8x1xf32>
    %62 = vector.broadcast %61 : vector<8x1xf32> to vector<8x8xf32>
    %63 = arith.divf %59, %62 : vector<8x8xf32>
    %cst_27 = arith.constant dense<0.000000e+00> : vector<8x16xf32>
    %64 = tpu.matmul %63, %49, %cst_27 {dimension_numbers = #tpu.dot_dimension_numbers<[1], [0], [0], [1], [0, 0, 1, 1], [], []>} : vector<8x8xf32>, vector<8x16xf32>, vector<8x16xf32> -> vector<8x16xf32>
    %65 = vector.extract_strided_slice %3 {offsets = [0, 48], sizes = [8, 16], strides = [1, 1]} : vector<8x64xf32> to vector<8x16xf32>
    %66 = vector.extract_strided_slice %5 {offsets = [0, 48], sizes = [8, 16], strides = [1, 1]} : vector<8x64xf32> to vector<8x16xf32>
    %67 = vector.extract_strided_slice %7 {offsets = [0, 48], sizes = [8, 16], strides = [1, 1]} : vector<8x64xf32> to vector<8x16xf32>
    %cst_28 = arith.constant dense<0.000000e+00> : vector<8x8xf32>
    %68 = tpu.matmul %65, %66, %cst_28 {dimension_numbers = #tpu.dot_dimension_numbers<[1], [1], [0], [0], [0, 0, 1, 0], [], []>} : vector<8x16xf32>, vector<8x16xf32>, vector<8x8xf32> -> vector<8x8xf32>
    %cst_29 = arith.constant 1.250000e-01 : f32
    %69 = vector.broadcast %cst_29 : f32 to vector<8x8xf32>
    %70 = arith.mulf %68, %69 : vector<8x8xf32>
    %cst_30 = arith.constant 0xFF800000 : f32
    %71 = vector.broadcast %cst_30 : f32 to vector<8x8xf32>
    %72 = arith.select %10, %70, %71 : vector<8x8xi1>, vector<8x8xf32>
    %cst_31 = arith.constant dense<0xFF800000> : vector<8xf32>
    %73 = vector.multi_reduction <maximumf>, %72, %cst_31 [1] : vector<8x8xf32> to vector<8xf32>
    %74 = vector.shape_cast %73 : vector<8xf32> to vector<8x1xf32>
    %75 = vector.broadcast %74 : vector<8x1xf32> to vector<8x8xf32>
    %76 = arith.subf %72, %75 : vector<8x8xf32>
    %77 = math.exp %76 : vector<8x8xf32>
    %cst_32 = arith.constant dense<0.000000e+00> : vector<8xf32>
    %78 = vector.multi_reduction <add>, %77, %cst_32 [1] : vector<8x8xf32> to vector<8xf32>
    %79 = vector.shape_cast %78 : vector<8xf32> to vector<8x1xf32>
    %80 = vector.broadcast %79 : vector<8x1xf32> to vector<8x8xf32>
    %81 = arith.divf %77, %80 : vector<8x8xf32>
    %cst_33 = arith.constant dense<0.000000e+00> : vector<8x16xf32>
    %82 = tpu.matmul %81, %67, %cst_33 {dimension_numbers = #tpu.dot_dimension_numbers<[1], [0], [0], [1], [0, 0, 1, 1], [], []>} : vector<8x8xf32>, vector<8x16xf32>, vector<8x16xf32> -> vector<8x16xf32>
    %83 = tpu.concatenate %28, %46, %64, %82 in 1 : vector<8x16xf32>, vector<8x16xf32>, vector<8x16xf32>, vector<8x16xf32> -> vector<8x64xf32>
    %c0_34 = arith.constant 0 : index
    %c0_35 = arith.constant 0 : index
    %84 = vector.load %arg5[%c0_34, %c0_35] : memref<64x64xf32, #tpu.memory_space<vmem>>, vector<64x64xf32>
    %cst_36 = arith.constant dense<0.000000e+00> : vector<8x64xf32>
    %85 = tpu.matmul %83, %84, %cst_36 {dimension_numbers = #tpu.dot_dimension_numbers<[1], [0], [0], [1], [0, 0, 1, 1], [], []>} : vector<8x64xf32>, vector<64x64xf32>, vector<8x64xf32> -> vector<8x64xf32>
    %c0_37 = arith.constant 0 : index
    %c0_38 = arith.constant 0 : index
    %86 = vector.load %arg6[%c0_37, %c0_38] : memref<1x64xf32, #tpu.memory_space<vmem>>, vector<1x64xf32>
    %87 = vector.broadcast %86 : vector<1x64xf32> to vector<8x64xf32>
    %88 = arith.addf %85, %87 : vector<8x64xf32>
    %c0_39 = arith.constant 0 : index
    %c0_40 = arith.constant 0 : index
    %c0_41 = arith.constant 0 : index
    %89 = vector.load %arg7[%c0_39, %c0_40, %c0_41] : memref<1x8x64xf32, #tpu.memory_space<vmem>>, vector<1x8x64xf32>
    %90 = vector.shape_cast %89 : vector<1x8x64xf32> to vector<8x64xf32>
    %91 = vector.shape_cast %88 : vector<8x64xf32> to vector<1x8x64xf32>
    tpu.vector_store %arg7[%c0_39, %c0_40, %c0_41], %91 {strides = array<i32>} : memref<1x8x64xf32, #tpu.memory_space<vmem>>, vector<1x8x64xf32>,
    return
  }
  func.func @transform_0(%arg0: i32) -> (i32, i32, i32) {
    %c0_i32 = arith.constant 0 : i32
    %c0_i32_0 = arith.constant 0 : i32
    %c0_i32_1 = arith.constant 0 : i32
    return %arg0, %c0_i32, %c0_i32_0 : i32, i32, i32
  }
  func.func @transform_1(%arg0: i32) -> (i32, i32) {
    %c0_i32 = arith.constant 0 : i32
    %c0_i32_0 = arith.constant 0 : i32
    %c0_i32_1 = arith.constant 0 : i32
    return %c0_i32, %c0_i32_0 : i32, i32
  }
  func.func @transform_2(%arg0: i32) -> (i32, i32) {
    %c0_i32 = arith.constant 0 : i32
    %c0_i32_0 = arith.constant 0 : i32
    %c0_i32_1 = arith.constant 0 : i32
    return %c0_i32, %c0_i32_0 : i32, i32
  }
  func.func @transform_3(%arg0: i32) -> (i32, i32) {
    %c0_i32 = arith.constant 0 : i32
    %c0_i32_0 = arith.constant 0 : i32
    %c0_i32_1 = arith.constant 0 : i32
    return %c0_i32, %c0_i32_0 : i32, i32
  }
  func.func @transform_4(%arg0: i32) -> (i32, i32) {
    %c0_i32 = arith.constant 0 : i32
    %c0_i32_0 = arith.constant 0 : i32
    %c0_i32_1 = arith.constant 0 : i32
    return %c0_i32, %c0_i32_0 : i32, i32
  }
  func.func @transform_5(%arg0: i32) -> (i32, i32) {
    %c0_i32 = arith.constant 0 : i32
    %c0_i32_0 = arith.constant 0 : i32
    %c0_i32_1 = arith.constant 0 : i32
    return %c0_i32, %c0_i32_0 : i32, i32
  }
  func.func @transform_6(%arg0: i32) -> (i32, i32, i32) {
    %c0_i32 = arith.constant 0 : i32
    %c0_i32_0 = arith.constant 0 : i32
    %c0_i32_1 = arith.constant 0 : i32
    return %arg0, %c0_i32, %c0_i32_0 : i32, i32, i32
  }
}

</mosaic_0001>

<llo_original>
// kernel: tpu_custom_call.1
$region0: #{tpu_custom_call.1}
  #allocation0 [shape = 'u32[]', space=smem, size = 0x4, offset = 0x4, fixed_abs, tag = 'smem constant byte address 0x4 - core index']
  #allocation1 [shape = 'u32[144,128]{1,0:T(1,128)}', space=vmem, size = 0x12000, scoped, tag = 'internal scratch']
  %s0 = inlined_call_operand.hbm [shape: f32[2,8,64], index: 0, kind: input, shape index: {}]
  %s1 = inlined_call_operand.hbm [shape: f32[64,64], index: 1, kind: input, shape index: {}]
  %s2 = inlined_call_operand.hbm [shape: f32[64,64], index: 2, kind: input, shape index: {}]
  %s3 = inlined_call_operand.hbm [shape: f32[64,64], index: 3, kind: input, shape index: {}]
  %s4 = inlined_call_operand.hbm [shape: f32[64,64], index: 4, kind: input, shape index: {}]
  %s5 = inlined_call_operand.vmem [shape: f32[1,64], index: 5, kind: input, shape index: {}]
  %s6 = inlined_call_operand.hbm [shape: f32[2,8,64], index: 6, kind: output, shape index: {}]
  %s7 = sld [smem:[#allocation0]]
  $region77: #{tpu_custom_call.1} parent=0
    _
  %s9 = ssub.s32 1, %s7
  %s10 = scalar_select 0, %s9, %s7
  $region1: #{tpu_custom_call.1} parent=0
    #allocation2 [shape = 'u8[8192]{0}', space=vmem, size = 0x2000, scoped, tag = 'input window, operand 0']
    #allocation3 [shape = 's32[2]{0}', space=sflag, size = 0x8, scoped, tag = 'scoped memory for tpu_custom_call.1']
    #allocation4 [shape = 's32[2]{0}', space=sflag, size = 0x8, scoped, tag = 'scoped memory for tpu_custom_call.1']
    #allocation5 [shape = 'u8[32768]{0}', space=vmem, size = 0x8000, scoped, tag = 'input window, operand 1, single buffered']
    #allocation6 [shape = 's32[1]{0}', space=sflag, size = 0x4, scoped, tag = 'scoped memory for tpu_custom_call.1']
    #allocation7 [shape = 'u8[32768]{0}', space=vmem, size = 0x8000, scoped, tag = 'input window, operand 2, single buffered']
    #allocation8 [shape = 'u8[32768]{0}', space=vmem, size = 0x8000, scoped, tag = 'input window, operand 3, single buffered']
    #allocation9 [shape = 's32[1]{0}', space=sflag, size = 0x4, scoped, tag = 'scoped memory for tpu_custom_call.1']
    #allocation10 [shape = 'u8[32768]{0}', space=vmem, size = 0x8000, scoped, tag = 'input window, operand 4, single buffered']
    #allocation11 [shape = 'u8[8192]{0}', space=vmem, size = 0x2000, scoped, tag = 'output window, operand 0']
    %11 = vsyncpa [#allocation3], 0
    %s12 = scalar_lea.sflag [#allocation3], 1
    %13 = vsyncpa %s12, 0
    %14 = vsyncpa [#allocation6], 0
    %15 = vsyncpa [#allocation9], 0
    %16 = vsyncpa [#allocation4], 0
    %s17 = scalar_lea.sflag [#allocation4], 1
    %18 = vsyncpa %s17, 0
    loop: start=0, step=1, limit=4
    $region2: #{tpu_custom_call.1} parent=1 // loop_pre_header
      _
    $region3: #{tpu_custom_call.1} parent=1 // loop_header
      %s20 = sphi 0, %s24
      %p21 = scmp.ge.s32.totalorder %s20, 4
      %s30 = sphi 0, %s32
      %s33 = sphi 0, %s30
      %s34 = sphi 0, %s33
      %s50 = sphi 0, %s34
      %s54 = sphi 0, %s54
      %s56 = sphi 0, %s54
      %s57 = sphi 0, %s56
      %s71 = sphi 0, %s57
      %s75 = sphi 0, %s75
      %s77 = sphi 0, %s75
      %s78 = sphi 0, %s77
      %s92 = sphi 0, %s78
      %s96 = sphi 0, %s96
      %s98 = sphi 0, %s96
      %s99 = sphi 0, %s98
      %s113 = sphi 0, %s99
      %s117 = sphi 0, %s117
      %s119 = sphi 0, %s117
      %s120 = sphi 0, %s119
      %s134 = sphi 0, %s120
      %s138 = sphi 0, %s138
      %s140 = sphi 0, %s138
      %s141 = sphi 0, %s140
      %s155 = sphi 0, %s141
      %s161 = sphi 0, %s163
      %s164 = sphi 0, %s161
      %s165 = sphi 0, %s164
      %s181 = sphi 0, %s165
    $region4: #{tpu_custom_call.1} parent=1 // loop_header_branch
      %23 = sbr.rel (%p21) target = $region8
    $region5: #{tpu_custom_call.1} parent=1 // loop_body
      %s25 = ssub.s32 %s20, 1
      %s26 = ssub.s32 %s20, 2
      %s27 = sadd.s32 %s20, 1
      %s28 = ssub.s32 %s20, %s27
      %p29 = scmp.eq.s32.totalorder %s28, 0
      %s31 = sadd.s32 %s30, 1
      %s32 = scalar_select %p29, %s30, %s31
      %p35 = pneg %p29
      %p36 = scmp.eq.s32.totalorder %s20, 1
      %p37 = por %p35, %p36
      %p38 = scmp.ne.s32.totalorder %s30, %s33
      %p39 = scmp.eq.s32.totalorder %s20, 0
      %p40 = por %p38, %p39
      %p41 = scmp.ne.s32.totalorder %s30, %s33
      %p42 = scmp.eq.s32.totalorder %s25, 1
      %p43 = por %p41, %p42
      %p44 = scmp.ne.s32.totalorder %s33, %s34
      %p45 = scmp.eq.s32.totalorder %s25, 0
      %p46 = por %p44, %p45
      %p47 = scmp.ne.s32.totalorder %s33, %s34
      %p48 = scmp.eq.s32.totalorder %s26, 1
      %p49 = por %p47, %p48
      %p51 = scmp.ne.s32.totalorder %s34, %s50
      %p52 = scmp.eq.s32.totalorder %s26, 0
      %p53 = por %p51, %p52
      %s55 = sadd.s32 %s54, 1
      %p58 = scmp.eq.s32.totalorder %s20, 1
      %p59 = scmp.ne.s32.totalorder %s54, %s56
      %p60 = scmp.eq.s32.totalorder %s20, 0
      %p61 = por %p59, %p60
      %p62 = scmp.ne.s32.totalorder %s54, %s56
      %p63 = scmp.eq.s32.totalorder %s25, 1
      %p64 = por %p62, %p63
      %p65 = scmp.ne.s32.totalorder %s56, %s57
      %p66 = scmp.eq.s32.totalorder %s25, 0
      %p67 = por %p65, %p66
      %p68 = scmp.ne.s32.totalorder %s56, %s57
      %p69 = scmp.eq.s32.totalorder %s26, 1
      %p70 = por %p68, %p69
      %p72 = scmp.ne.s32.totalorder %s57, %s71
      %p73 = scmp.eq.s32.totalorder %s26, 0
      %p74 = por %p72, %p73
      %s76 = sadd.s32 %s75, 1
      %p79 = scmp.eq.s32.totalorder %s20, 1
      %p80 = scmp.ne.s32.totalorder %s75, %s77
      %p81 = scmp.eq.s32.totalorder %s20, 0
      %p82 = por %p80, %p81
      %p83 = scmp.ne.s32.totalorder %s75, %s77
      %p84 = scmp.eq.s32.totalorder %s25, 1
      %p85 = por %p83, %p84
      %p86 = scmp.ne.s32.totalorder %s77, %s78
      %p87 = scmp.eq.s32.totalorder %s25, 0
      %p88 = por %p86, %p87
      %p89 = scmp.ne.s32.totalorder %s77, %s78
      %p90 = scmp.eq.s32.totalorder %s26, 1
      %p91 = por %p89, %p90
      %p93 = scmp.ne.s32.totalorder %s78, %s92
      %p94 = scmp.eq.s32.totalorder %s26, 0
      %p95 = por %p93, %p94
      %s97 = sadd.s32 %s96, 1
      %p100 = scmp.eq.s32.totalorder %s20, 1
      %p101 = scmp.ne.s32.totalorder %s96, %s98
      %p102 = scmp.eq.s32.totalorder %s20, 0
      %p103 = por %p101, %p102
      %p104 = scmp.ne.s32.totalorder %s96, %s98
      %p105 = scmp.eq.s32.totalorder %s25, 1
      %p106 = por %p104, %p105
      %p107 = scmp.ne.s32.totalorder %s98, %s99
      %p108 = scmp.eq.s32.totalorder %s25, 0
      %p109 = por %p107, %p108
      %p110 = scmp.ne.s32.totalorder %s98, %s99
      %p111 = scmp.eq.s32.totalorder %s26, 1
      %p112 = por %p110, %p111
      %p114 = scmp.ne.s32.totalorder %s99, %s113
      %p115 = scmp.eq.s32.totalorder %s26, 0
      %p116 = por %p114, %p115
      %s118 = sadd.s32 %s117, 1
      %p121 = scmp.eq.s32.totalorder %s20, 1
      %p122 = scmp.ne.s32.totalorder %s117, %s119
      %p123 = scmp.eq.s32.totalorder %s20, 0
      %p124 = por %p122, %p123
      %p125 = scmp.ne.s32.totalorder %s117, %s119
      %p126 = scmp.eq.s32.totalorder %s25, 1
      %p127 = por %p125, %p126
      %p128 = scmp.ne.s32.totalorder %s119, %s120
      %p129 = scmp.eq.s32.totalorder %s25, 0
      %p130 = por %p128, %p129
      %p131 = scmp.ne.s32.totalorder %s119, %s120
      %p132 = scmp.eq.s32.totalorder %s26, 1
      %p133 = por %p131, %p132
      %p135 = scmp.ne.s32.totalorder %s120, %s134
      %p136 = scmp.eq.s32.totalorder %s26, 0
      %p137 = por %p135, %p136
      %s139 = sadd.s32 %s138, 1
      %p142 = scmp.eq.s32.totalorder %s20, 1
      %p143 = scmp.ne.s32.totalorder %s138, %s140
      %p144 = scmp.eq.s32.totalorder %s20, 0
      %p145 = por %p143, %p144
      %p146 = scmp.ne.s32.totalorder %s138, %s140
      %p147 = scmp.eq.s32.totalorder %s25, 1
      %p148 = por %p146, %p147
      %p149 = scmp.ne.s32.totalorder %s140, %s141
      %p150 = scmp.eq.s32.totalorder %s25, 0
      %p151 = por %p149, %p150
      %p152 = scmp.ne.s32.totalorder %s140, %s141
      %p153 = scmp.eq.s32.totalorder %s26, 1
      %p154 = por %p152, %p153
      %p156 = scmp.ne.s32.totalorder %s141, %s155
      %p157 = scmp.eq.s32.totalorder %s26, 0
      %p158 = por %p156, %p157
      %s159 = ssub.s32 %s20, %s27
      %p160 = scmp.eq.s32.totalorder %s159, 0
      %s162 = sadd.s32 %s161, 1
      %s163 = scalar_select %p160, %s161, %s162
      %p166 = pneg %p160
      %p167 = scmp.eq.s32.totalorder %s20, 1
      %p168 = por %p166, %p167
      %p169 = scmp.ne.s32.totalorder %s161, %s164
      %p170 = scmp.eq.s32.totalorder %s20, 0
      %p171 = por %p169, %p170
      %p172 = scmp.ne.s32.totalorder %s161, %s164
      %p173 = scmp.eq.s32.totalorder %s25, 1
      %p174 = por %p172, %p173
      %p175 = scmp.ne.s32.totalorder %s164, %s165
      %p176 = scmp.eq.s32.totalorder %s25, 0
      %p177 = por %p175, %p176
      %p178 = scmp.ne.s32.totalorder %s164, %s165
      %p179 = scmp.eq.s32.totalorder %s26, 1
      %p180 = por %p178, %p179
      %p182 = scmp.ne.s32.totalorder %s165, %s181
      %p183 = scmp.eq.s32.totalorder %s26, 0
      %p184 = por %p182, %p183
      %p185 = scmp.le.s32.totalorder 1, %s20
      %p186 = scmp.lt.s32.totalorder %s20, 3
      %p187 = pnand %p185, %p186
      %p188 = pneg %p187
      // Predicated region
      $region9: #{tpu_custom_call.1} parent=5 // pred_check
        _
      $region10: #{tpu_custom_call.1} parent=5 // pred_check_branch
        %190 = sbr.rel (%p187) target = $region12
      $region11: #{tpu_custom_call.1} parent=5 // pred_region
        %s191 = ssub.s32 %s20, 1
        // Predicated region
        $region13: #{tpu_custom_call.1} parent=11 // pred_check
          %p192 = pneg %p67
        $region14: #{tpu_custom_call.1} parent=11 // pred_check_branch
          %194 = sbr.rel (%p192) target = $region16
        $region15: #{tpu_custom_call.1} parent=11 // pred_region
          %s196 = ssub.s32 1024, 1024
          %197 = vsyncadd [#allocation6], %s196
          %s198 = sshll.u32 [#allocation5], 4
          %s199 = int_to_ptr.vmem [resolvable:$true] %s198
          %204 = dma.hbm_to_vmem [thread:$0]  %s1, 1024, %s199, [#allocation6], 128, 128, 8
        $region16: #{tpu_custom_call.1} parent=11 // pred_fallthru
          _
        // Predicated region
        $region17: #{tpu_custom_call.1} parent=11 // pred_check
          %p205 = pneg %p88
        $region18: #{tpu_custom_call.1} parent=11 // pred_check_branch
          %207 = sbr.rel (%p205) target = $region20
        $region19: #{tpu_custom_call.1} parent=11 // pred_region
          %s209 = ssub.s32 1024, 1024
          %210 = vsyncadd [#allocation6], %s209
          %s211 = sshll.u32 [#allocation7], 4
          %s212 = int_to_ptr.vmem [resolvable:$true] %s211
          %217 = dma.hbm_to_vmem [thread:$0]  %s2, 1024, %s212, [#allocation6], 128, 128, 8
        $region20: #{tpu_custom_call.1} parent=11 // pred_fallthru
          _
        // Predicated region
        $region21: #{tpu_custom_call.1} parent=11 // pred_check
          %p218 = pneg %p109
        $region22: #{tpu_custom_call.1} parent=11 // pred_check_branch
          %220 = sbr.rel (%p218) target = $region24
        $region23: #{tpu_custom_call.1} parent=11 // pred_region
          %s222 = ssub.s32 1024, 1024
          %223 = vsyncadd [#allocation9], %s222
          %s224 = sshll.u32 [#allocation8], 4
          %s225 = int_to_ptr.vmem [resolvable:$true] %s224
          %230 = dma.hbm_to_vmem [thread:$0]  %s3, 1024, %s225, [#allocation9], 128, 128, 8
        $region24: #{tpu_custom_call.1} parent=11 // pred_fallthru
          _
        // Predicated region
        $region25: #{tpu_custom_call.1} parent=11 // pred_check
          %p231 = pneg %p130
        $region26: #{tpu_custom_call.1} parent=11 // pred_check_branch
          %233 = sbr.rel (%p231) target = $region28
        $region27: #{tpu_custom_call.1} parent=11 // pred_region
          %s235 = ssub.s32 1024, 1024
          %236 = vsyncadd [#allocation9], %s235
          %s237 = sshll.u32 [#allocation10], 4
          %s238 = int_to_ptr.vmem [resolvable:$true] %s237
          %243 = dma.hbm_to_vmem [thread:$0]  %s4, 1024, %s238, [#allocation9], 128, 128, 8
        $region28: #{tpu_custom_call.1} parent=11 // pred_fallthru
          _
        // Predicated region
        $region29: #{tpu_custom_call.1} parent=11 // pred_check
          %p244 = pneg %p151
        $region30: #{tpu_custom_call.1} parent=11 // pred_check_branch
          %246 = sbr.rel (%p244) target = $region32
        $region31: #{tpu_custom_call.1} parent=11 // pred_region
          _
        $region32: #{tpu_custom_call.1} parent=11 // pred_fallthru
          _
      $region12: #{tpu_custom_call.1} parent=5 // pred_fallthru
        _
      %p247 = scmp.lt.s32.totalorder %s20, 2
      // Predicated region
      $region33: #{tpu_custom_call.1} parent=5 // pred_check
        %p248 = pneg %p247
      $region34: #{tpu_custom_call.1} parent=5 // pred_check_branch
        %250 = sbr.rel (%p248) target = $region36
      $region35: #{tpu_custom_call.1} parent=5 // pred_region
        // Predicated region
        $region37: #{tpu_custom_call.1} parent=35 // pred_check
          %p251 = pneg %p40
        $region38: #{tpu_custom_call.1} parent=35 // pred_check_branch
          %253 = sbr.rel (%p251) target = $region40
        $region39: #{tpu_custom_call.1} parent=35 // pred_region
          %s254 = sand.u32 %s30, 1
          %s255 = scalar_lea.sflag [#allocation3], %s254
          %s256 = sand.u32 %s30, 1
          %s257 = smul.addr %s256, 8
          %s258 = scalar_lea.vmem [#allocation2], %s257
          %s260 = ssub.s32 128, 128
          %261 = vsyncadd %s255, %s260
          %s262 = smul.addr %s20, 128
          %s263 = scalar_lea.hbm %s0, %s262
          %s265 = sshll.u32 %s258, 4
          %s266 = int_to_ptr.vmem [resolvable:$true] %s265
          %268 = dma.hbm_to_vmem [thread:$0]  %s263, 128, %s266, %s255
        $region40: #{tpu_custom_call.1} parent=35 // pred_fallthru
          _
      $region36: #{tpu_custom_call.1} parent=5 // pred_fallthru
        _
      %p269 = scmp.le.s32.totalorder 1, %s20
      %p270 = scmp.lt.s32.totalorder %s20, 3
      %p271 = pnand %p269, %p270
      %p272 = pneg %p271
      // Predicated region
      $region41: #{tpu_custom_call.1} parent=5 // pred_check
        _
      $region42: #{tpu_custom_call.1} parent=5 // pred_check_branch
        %274 = sbr.rel (%p271) target = $region44
      $region43: #{tpu_custom_call.1} parent=5 // pred_region
        %s275 = ssub.s32 %s20, 1
        %s276 = sand.u32 %s33, 1
        %s277 = scalar_lea.sflag [#allocation3], %s276
        %s278 = sand.u32 %s33, 1
        %s279 = smul.addr %s278, 8
        %s280 = scalar_lea.vmem [#allocation2], %s279
        // Predicated region
        $region45: #{tpu_custom_call.1} parent=43 // pred_check
          %p281 = pneg %p46
        $region46: #{tpu_custom_call.1} parent=43 // pred_check_branch
          %283 = sbr.rel (%p281) target = $region48
        $region47: #{tpu_custom_call.1} parent=43 // pred_region
          %284 = dma.done %s277, 128
        $region48: #{tpu_custom_call.1} parent=43 // pred_fallthru
          _
        // Predicated region
        $region49: #{tpu_custom_call.1} parent=43 // pred_check
          %p285 = pneg %p67
        $region50: #{tpu_custom_call.1} parent=43 // pred_check_branch
          %287 = sbr.rel (%p285) target = $region52
        $region51: #{tpu_custom_call.1} parent=43 // pred_region
          %288 = dma.done [#allocation6], 1024
        $region52: #{tpu_custom_call.1} parent=43 // pred_fallthru
          _
        // Predicated region
        $region53: #{tpu_custom_call.1} parent=43 // pred_check
          %p289 = pneg %p88
        $region54: #{tpu_custom_call.1} parent=43 // pred_check_branch
          %291 = sbr.rel (%p289) target = $region56
        $region55: #{tpu_custom_call.1} parent=43 // pred_region
          %292 = dma.done [#allocation6], 1024
        $region56: #{tpu_custom_call.1} parent=43 // pred_fallthru
          _
        // Predicated region
        $region57: #{tpu_custom_call.1} parent=43 // pred_check
          %p293 = pneg %p109
        $region58: #{tpu_custom_call.1} parent=43 // pred_check_branch
          %295 = sbr.rel (%p293) target = $region60
        $region59: #{tpu_custom_call.1} parent=43 // pred_region
          %296 = dma.done [#allocation9], 1024
        $region60: #{tpu_custom_call.1} parent=43 // pred_fallthru
          _
        // Predicated region
        $region61: #{tpu_custom_call.1} parent=43 // pred_check
          %p297 = pneg %p130
        $region62: #{tpu_custom_call.1} parent=43 // pred_check_branch
          %299 = sbr.rel (%p297) target = $region64
        $region63: #{tpu_custom_call.1} parent=43 // pred_region
          %300 = dma.done [#allocation9], 1024
        $region64: #{tpu_custom_call.1} parent=43 // pred_fallthru
          _
        %s301 = sand.u32 %s33, 1
        %s302 = scalar_lea.sflag [#allocation3], %s301
        %s303 = sand.u32 %s33, 1
        %s304 = smul.addr %s303, 8
        %s305 = scalar_lea.vmem [#allocation2], %s304
        %p306 = pneg %p46
        %p307 = pneg %p43
        %p308 = pneg %p67
        %p309 = pneg %p64
        %p310 = pneg %p88
        %p311 = pneg %p85
        %p312 = pneg %p109
        %p313 = pneg %p106
        %p314 = pneg %p130
        %p315 = pneg %p127
        %p316 = pneg %p151
        %p317 = pneg %p148
        %p318 = pneg %p177
        %p319 = pneg %p174
        %s320 = sand.u32 %s164, 1
        %s321 = scalar_lea.sflag [#allocation4], %s320
        %s322 = sand.u32 %s164, 1
        %s323 = smul.addr %s322, 8
        %s324 = scalar_lea.vmem [#allocation11], %s323
        %v325 = vld [vmem:[%s280] sm:$0xff]
        %v326 = vld [vmem:[#allocation5] sm:$0xff]
        %v327 = vld [vmem:[#allocation5 + $0x8] sm:$0xff]
        %v328 = vld [vmem:[#allocation5 + $0x10] sm:$0xff]
        %v329 = vld [vmem:[#allocation5 + $0x18] sm:$0xff]
        %v330 = vld [vmem:[#allocation5 + $0x20] sm:$0xff]
        %v331 = vld [vmem:[#allocation5 + $0x28] sm:$0xff]
        %v332 = vld [vmem:[#allocation5 + $0x30] sm:$0xff]
        %v333 = vld [vmem:[#allocation5 + $0x38] sm:$0xff]
        %vm334 = vcmask 523264
        %v336 = vsel %vm334, %v325, 0
        %338 = vmatprep.subr.mxu0 0.0
        %339 = vmatpush1.msra.mxu0 0.0
        %340 = vmatprep.subr.mxu0 0.0
        %341 = vmatpush1.msra.mxu0 0.0
        %342 = vmatprep.subr.mxu0 0.0
        %343 = vmatpush1.msra.mxu0 0.0
        %344 = vmatprep.subr.mxu0 0.0
        %345 = vmatpush1.msra.mxu0 0.0
        %346 = vmatprep.subr.mxu0 0.0
        %347 = vmatpush1.msra.mxu0 0.0
        %348 = vmatprep.subr.mxu0 0.0
        %349 = vmatpush1.msra.mxu0 0.0
        %350 = vmatprep.subr.mxu0 0.0
        %351 = vmatpush1.msra.mxu0 0.0
        %352 = vmatprep.subr.mxu0 0.0
        %353 = vmatpush1.msra.mxu0 0.0
        %354 = vmatprep.subr.mxu0 0.0
        %355 = vmatpush1.msra.mxu0 %v333
        %356 = vmatprep.subr.mxu0 0.0
        %357 = vmatpush1.msra.mxu0 %v332
        %358 = vmatprep.subr.mxu0 0.0
        %359 = vmatpush1.msra.mxu0 %v331
        %360 = vmatprep.subr.mxu0 0.0
        %361 = vmatpush1.msra.mxu0 %v330
        %362 = vmatprep.subr.mxu0 0.0
        %363 = vmatpush1.msra.mxu0 %v329
        %364 = vmatprep.subr.mxu0 0.0
        %365 = vmatpush1.msra.mxu0 %v328
        %366 = vmatprep.subr.mxu0 0.0
        %367 = vmatpush1.msra.mxu0 %v327
        %368 = vmatprep.subr.mxu0 0.0
        %369 = vmatpush1.msra.mxu0 %v326
        %370 = vmatprep.subr.mxu0 0.0
        %371 = vmatpush2.msra.mxu0 0.0
        %372 = vmatprep.subr.mxu0 0.0
        %373 = vmatpush2.msra.mxu0 0.0
        %374 = vmatprep.subr.mxu0 0.0
        %375 = vmatpush2.msra.mxu0 0.0
        %376 = vmatprep.subr.mxu0 0.0
        %377 = vmatpush2.msra.mxu0 0.0
        %378 = vmatprep.subr.mxu0 0.0
        %379 = vmatpush2.msra.mxu0 0.0
        %380 = vmatprep.subr.mxu0 0.0
        %381 = vmatpush2.msra.mxu0 0.0
        %382 = vmatprep.subr.mxu0 0.0
        %383 = vmatpush2.msra.mxu0 0.0
        %384 = vmatprep.subr.mxu0 0.0
        %385 = vmatpush2.msra.mxu0 0.0
        %386 = vmatprep.subr.mxu0 0.0
        %387 = vmatpush2.msra.mxu0 0.0
        %388 = vmatprep.subr.mxu0 0.0
        %389 = vmatpush2.msra.mxu0 0.0
        %390 = vmatprep.subr.mxu0 0.0
        %391 = vmatpush2.msra.mxu0 0.0
        %392 = vmatprep.subr.mxu0 0.0
        %393 = vmatpush2.msra.mxu0 0.0
        %394 = vmatprep.subr.mxu0 0.0
        %395 = vmatpush2.msra.mxu0 0.0
        %396 = vmatprep.subr.mxu0 0.0
        %397 = vmatpush2.msra.mxu0 0.0
        %398 = vmatprep.subr.mxu0 0.0
        %399 = vmatpush2.msra.mxu0 0.0
        %400 = vmatprep.subr.mxu0 0.0
        %401 = vmatpush2.msra.mxu0 0.0
        %402 = vmatprep.mubr.f32.mxu0 0.0
        %403 = vmatmul.mubr.f32.gmra.mxu0 %v336
        %v404 = vpop.f32.mrf.mxu0
        %v405 = vadd.f32 0.0, %v404
        %v406 = vpop.f32.mrf.mxu0
        %407 = vdwg.mxu0
        %v408 = vld [vmem:[#allocation7] sm:$0xff]
        %v409 = vld [vmem:[#allocation7 + $0x8] sm:$0xff]
        %v410 = vld [vmem:[#allocation7 + $0x10] sm:$0xff]
        %v411 = vld [vmem:[#allocation7 + $0x18] sm:$0xff]
        %v412 = vld [vmem:[#allocation7 + $0x20] sm:$0xff]
        %v413 = vld [vmem:[#allocation7 + $0x28] sm:$0xff]
        %v414 = vld [vmem:[#allocation7 + $0x30] sm:$0xff]
        %v415 = vld [vmem:[#allocation7 + $0x38] sm:$0xff]
        %416 = vmatprep.subr.mxu0 0.0
        %417 = vmatpush1.msra.mxu0 0.0
        %418 = vmatprep.subr.mxu0 0.0
        %419 = vmatpush1.msra.mxu0 0.0
        %420 = vmatprep.subr.mxu0 0.0
        %421 = vmatpush1.msra.mxu0 0.0
        %422 = vmatprep.subr.mxu0 0.0
        %423 = vmatpush1.msra.mxu0 0.0
        %424 = vmatprep.subr.mxu0 0.0
        %425 = vmatpush1.msra.mxu0 0.0
        %426 = vmatprep.subr.mxu0 0.0
        %427 = vmatpush1.msra.mxu0 0.0
        %428 = vmatprep.subr.mxu0 0.0
        %429 = vmatpush1.msra.mxu0 0.0
        %430 = vmatprep.subr.mxu0 0.0
        %431 = vmatpush1.msra.mxu0 0.0
        %432 = vmatprep.subr.mxu0 0.0
        %433 = vmatpush1.msra.mxu0 %v415
        %434 = vmatprep.subr.mxu0 0.0
        %435 = vmatpush1.msra.mxu0 %v414
        %436 = vmatprep.subr.mxu0 0.0
        %437 = vmatpush1.msra.mxu0 %v413
        %438 = vmatprep.subr.mxu0 0.0
        %439 = vmatpush1.msra.mxu0 %v412
        %440 = vmatprep.subr.mxu0 0.0
        %441 = vmatpush1.msra.mxu0 %v411
        %442 = vmatprep.subr.mxu0 0.0
        %443 = vmatpush1.msra.mxu0 %v410
        %444 = vmatprep.subr.mxu0 0.0
        %445 = vmatpush1.msra.mxu0 %v409
        %446 = vmatprep.subr.mxu0 0.0
        %447 = vmatpush1.msra.mxu0 %v408
        %448 = vmatprep.subr.mxu0 0.0
        %449 = vmatpush2.msra.mxu0 0.0
        %450 = vmatprep.subr.mxu0 0.0
        %451 = vmatpush2.msra.mxu0 0.0
        %452 = vmatprep.subr.mxu0 0.0
        %453 = vmatpush2.msra.mxu0 0.0
        %454 = vmatprep.subr.mxu0 0.0
        %455 = vmatpush2.msra.mxu0 0.0
        %456 = vmatprep.subr.mxu0 0.0
        %457 = vmatpush2.msra.mxu0 0.0
        %458 = vmatprep.subr.mxu0 0.0
        %459 = vmatpush2.msra.mxu0 0.0
        %460 = vmatprep.subr.mxu0 0.0
        %461 = vmatpush2.msra.mxu0 0.0
        %462 = vmatprep.subr.mxu0 0.0
        %463 = vmatpush2.msra.mxu0 0.0
        %464 = vmatprep.subr.mxu0 0.0
        %465 = vmatpush2.msra.mxu0 0.0
        %466 = vmatprep.subr.mxu0 0.0
        %467 = vmatpush2.msra.mxu0 0.0
        %468 = vmatprep.subr.mxu0 0.0
        %469 = vmatpush2.msra.mxu0 0.0
        %470 = vmatprep.subr.mxu0 0.0
        %471 = vmatpush2.msra.mxu0 0.0
        %472 = vmatprep.subr.mxu0 0.0
        %473 = vmatpush2.msra.mxu0 0.0
        %474 = vmatprep.subr.mxu0 0.0
        %475 = vmatpush2.msra.mxu0 0.0
        %476 = vmatprep.subr.mxu0 0.0
        %477 = vmatpush2.msra.mxu0 0.0
        %478 = vmatprep.subr.mxu0 0.0
        %479 = vmatpush2.msra.mxu0 0.0
        %480 = vmatprep.mubr.f32.mxu0 0.0
        %481 = vmatmul.mubr.f32.gmra.mxu0 %v336
        %v482 = vpop.f32.mrf.mxu0
        %v483 = vadd.f32 0.0, %v482
        %v484 = vpop.f32.mrf.mxu0
        %485 = vdwg.mxu0
        %v486 = vld [vmem:[#allocation8] sm:$0xff]
        %v487 = vld [vmem:[#allocation8 + $0x8] sm:$0xff]
        %v488 = vld [vmem:[#allocation8 + $0x10] sm:$0xff]
        %v489 = vld [vmem:[#allocation8 + $0x18] sm:$0xff]
        %v490 = vld [vmem:[#allocation8 + $0x20] sm:$0xff]
        %v491 = vld [vmem:[#allocation8 + $0x28] sm:$0xff]
        %v492 = vld [vmem:[#allocation8 + $0x30] sm:$0xff]
        %v493 = vld [vmem:[#allocation8 + $0x38] sm:$0xff]
        %494 = vmatprep.subr.mxu0 0.0
        %495 = vmatpush1.msra.mxu0 0.0
        %496 = vmatprep.subr.mxu0 0.0
        %497 = vmatpush1.msra.mxu0 0.0
        %498 = vmatprep.subr.mxu0 0.0
        %499 = vmatpush1.msra.mxu0 0.0
        %500 = vmatprep.subr.mxu0 0.0
        %501 = vmatpush1.msra.mxu0 0.0
        %502 = vmatprep.subr.mxu0 0.0
        %503 = vmatpush1.msra.mxu0 0.0
        %504 = vmatprep.subr.mxu0 0.0
        %505 = vmatpush1.msra.mxu0 0.0
        %506 = vmatprep.subr.mxu0 0.0
        %507 = vmatpush1.msra.mxu0 0.0
        %508 = vmatprep.subr.mxu0 0.0
        %509 = vmatpush1.msra.mxu0 0.0
        %510 = vmatprep.subr.mxu0 0.0
        %511 = vmatpush1.msra.mxu0 %v493
        %512 = vmatprep.subr.mxu0 0.0
        %513 = vmatpush1.msra.mxu0 %v492
        %514 = vmatprep.subr.mxu0 0.0
        %515 = vmatpush1.msra.mxu0 %v491
        %516 = vmatprep.subr.mxu0 0.0
        %517 = vmatpush1.msra.mxu0 %v490
        %518 = vmatprep.subr.mxu0 0.0
        %519 = vmatpush1.msra.mxu0 %v489
        %520 = vmatprep.subr.mxu0 0.0
        %521 = vmatpush1.msra.mxu0 %v488
        %522 = vmatprep.subr.mxu0 0.0
        %523 = vmatpush1.msra.mxu0 %v487
        %524 = vmatprep.subr.mxu0 0.0
        %525 = vmatpush1.msra.mxu0 %v486
        %526 = vmatprep.subr.mxu0 0.0
        %527 = vmatpush2.msra.mxu0 0.0
        %528 = vmatprep.subr.mxu0 0.0
        %529 = vmatpush2.msra.mxu0 0.0
        %530 = vmatprep.subr.mxu0 0.0
        %531 = vmatpush2.msra.mxu0 0.0
        %532 = vmatprep.subr.mxu0 0.0
        %533 = vmatpush2.msra.mxu0 0.0
        %534 = vmatprep.subr.mxu0 0.0
        %535 = vmatpush2.msra.mxu0 0.0
        %536 = vmatprep.subr.mxu0 0.0
        %537 = vmatpush2.msra.mxu0 0.0
        %538 = vmatprep.subr.mxu0 0.0
        %539 = vmatpush2.msra.mxu0 0.0
        %540 = vmatprep.subr.mxu0 0.0
        %541 = vmatpush2.msra.mxu0 0.0
        %542 = vmatprep.subr.mxu0 0.0
        %543 = vmatpush2.msra.mxu0 0.0
        %544 = vmatprep.subr.mxu0 0.0
        %545 = vmatpush2.msra.mxu0 0.0
        %546 = vmatprep.subr.mxu0 0.0
        %547 = vmatpush2.msra.mxu0 0.0
        %548 = vmatprep.subr.mxu0 0.0
        %549 = vmatpush2.msra.mxu0 0.0
        %550 = vmatprep.subr.mxu0 0.0
        %551 = vmatpush2.msra.mxu0 0.0
        %552 = vmatprep.subr.mxu0 0.0
        %553 = vmatpush2.msra.mxu0 0.0
        %554 = vmatprep.subr.mxu0 0.0
        %555 = vmatpush2.msra.mxu0 0.0
        %556 = vmatprep.subr.mxu0 0.0
        %557 = vmatpush2.msra.mxu0 0.0
        %558 = vmatprep.mubr.f32.mxu0 0.0
        %559 = vmatmul.mubr.f32.gmra.mxu0 %v336
        %v560 = vpop.f32.mrf.mxu0
        %v561 = vadd.f32 0.0, %v560
        %v562 = vpop.f32.mrf.mxu0
        %563 = vdwg.mxu0
        %v564 = vlaneseq
        %v565 = vshrl.u32 %v564, 7
        %v566 = vlaneseq
        %v567 = vand.u32 %v566, 127
        %vm568 = vcmp.ge.s32.totalorder %v565, %v567
        %vm569 = vcmask 130048
        %v571 = vsel %vm569, %v405, 0
        %v574 = vsel %vm569, %v483, 0
        %576 = vmatprep.subr.mxu0 0.0
        %577 = vmatpush1.xpose.msra.mxu0 0.0
        %578 = vmatprep.subr.mxu0 0.0
        %579 = vmatpush1.xpose.msra.mxu0 0.0
        %580 = vmatprep.subr.mxu0 0.0
        %581 = vmatpush1.xpose.msra.mxu0 0.0
        %582 = vmatprep.subr.mxu0 0.0
        %583 = vmatpush1.xpose.msra.mxu0 0.0
        %584 = vmatprep.subr.mxu0 0.0
        %585 = vmatpush1.xpose.msra.mxu0 0.0
        %586 = vmatprep.subr.mxu0 0.0
        %587 = vmatpush1.xpose.msra.mxu0 0.0
        %588 = vmatprep.subr.mxu0 0.0
        %589 = vmatpush1.xpose.msra.mxu0 0.0
        %590 = vmatprep.subr.mxu0 0.0
        %591 = vmatpush1.xpose.msra.mxu0 0.0
        %592 = vmatprep.subr.mxu0 0.0
        %593 = vmatpush1.xpose.msra.mxu0 0.0
        %594 = vmatprep.subr.mxu0 0.0
        %595 = vmatpush1.xpose.msra.mxu0 0.0
        %596 = vmatprep.subr.mxu0 0.0
        %597 = vmatpush1.xpose.msra.mxu0 0.0
        %598 = vmatprep.subr.mxu0 0.0
        %599 = vmatpush1.xpose.msra.mxu0 0.0
        %600 = vmatprep.subr.mxu0 0.0
        %601 = vmatpush1.xpose.msra.mxu0 0.0
        %602 = vmatprep.subr.mxu0 0.0
        %603 = vmatpush1.xpose.msra.mxu0 0.0
        %604 = vmatprep.subr.mxu0 0.0
        %605 = vmatpush1.xpose.msra.mxu0 0.0
        %606 = vmatprep.subr.mxu0 0.0
        %607 = vmatpush1.xpose.msra.mxu0 %v574
        %608 = vmatprep.subr.mxu0 0.0
        %609 = vmatpush2.xpose.msra.mxu0 0.0
        %610 = vmatprep.subr.mxu0 0.0
        %611 = vmatpush2.xpose.msra.mxu0 0.0
        %612 = vmatprep.subr.mxu0 0.0
        %613 = vmatpush2.xpose.msra.mxu0 0.0
        %614 = vmatprep.subr.mxu0 0.0
        %615 = vmatpush2.xpose.msra.mxu0 0.0
        %616 = vmatprep.subr.mxu0 0.0
        %617 = vmatpush2.xpose.msra.mxu0 0.0
        %618 = vmatprep.subr.mxu0 0.0
        %619 = vmatpush2.xpose.msra.mxu0 0.0
        %620 = vmatprep.subr.mxu0 0.0
        %621 = vmatpush2.xpose.msra.mxu0 0.0
        %622 = vmatprep.subr.mxu0 0.0
        %623 = vmatpush2.xpose.msra.mxu0 0.0
        %624 = vmatprep.subr.mxu0 0.0
        %625 = vmatpush2.xpose.msra.mxu0 0.0
        %626 = vmatprep.subr.mxu0 0.0
        %627 = vmatpush2.xpose.msra.mxu0 0.0
        %628 = vmatprep.subr.mxu0 0.0
        %629 = vmatpush2.xpose.msra.mxu0 0.0
        %630 = vmatprep.subr.mxu0 0.0
        %631 = vmatpush2.xpose.msra.mxu0 0.0
        %632 = vmatprep.subr.mxu0 0.0
        %633 = vmatpush2.xpose.msra.mxu0 0.0
        %634 = vmatprep.subr.mxu0 0.0
        %635 = vmatpush2.xpose.msra.mxu0 0.0
        %636 = vmatprep.subr.mxu0 0.0
        %637 = vmatpush2.xpose.msra.mxu0 0.0
        %638 = vmatprep.subr.mxu0 0.0
        %639 = vmatpush2.xpose.msra.mxu0 0.0
        %640 = vmatprep.mubr.f32.mxu0 0.0
        %641 = vmatmul.mubr.f32.gmra.mxu0 %v571
        %v642 = vpop.f32.mrf.mxu0
        %v643 = vadd.f32 0.0, %v642
        %v644 = vpop.f32.mrf.mxu0
        %645 = vdwg.mxu0
        %v646 = vmul.f32 %v643, 0.125
        %v647 = vsel %vm568, %v646, -inf
        %vm648 = vcmask 64512
        %v649 = vsel %vm648, %v647, -inf
        %650 = vmax.xlane.f32.xlu0 %v649
        %v651 = vpop.xlane.xlu0 %650
        %v652 = vsub.f32 %v647, %v651
        %v653 = vmul.f32 %v652, 1.442695
        %v654 = vpow.pop %v653
        %v655 = vsel %vm648, %v654, 0.0
        %656 = vadd.xlane.f32.xlu0 %v655
        %v657 = vpop.xlane.xlu0 %656
        %v658 = vrcp.pop %v657
        %v659 = vmul.f32 %v654, %v658
        %v661 = vsel %vm648, %v659, 0
        %663 = vmatprep.subr.mxu0 0.0
        %664 = vmatpush1.msra.mxu0 0.0
        %665 = vmatprep.subr.mxu0 0.0
        %666 = vmatpush1.msra.mxu0 0.0
        %667 = vmatprep.subr.mxu0 0.0
        %668 = vmatpush1.msra.mxu0 0.0
        %669 = vmatprep.subr.mxu0 0.0
        %670 = vmatpush1.msra.mxu0 0.0
        %671 = vmatprep.subr.mxu0 0.0
        %672 = vmatpush1.msra.mxu0 0.0
        %673 = vmatprep.subr.mxu0 0.0
        %674 = vmatpush1.msra.mxu0 0.0
        %675 = vmatprep.subr.mxu0 0.0
        %676 = vmatpush1.msra.mxu0 0.0
        %677 = vmatprep.subr.mxu0 0.0
        %678 = vmatpush1.msra.mxu0 0.0
        %679 = vmatprep.subr.mxu0 0.0
        %680 = vmatpush1.msra.mxu0 0.0
        %681 = vmatprep.subr.mxu0 0.0
        %682 = vmatpush1.msra.mxu0 0.0
        %683 = vmatprep.subr.mxu0 0.0
        %684 = vmatpush1.msra.mxu0 0.0
        %685 = vmatprep.subr.mxu0 0.0
        %686 = vmatpush1.msra.mxu0 0.0
        %687 = vmatprep.subr.mxu0 0.0
        %688 = vmatpush1.msra.mxu0 0.0
        %689 = vmatprep.subr.mxu0 0.0
        %690 = vmatpush1.msra.mxu0 0.0
        %691 = vmatprep.subr.mxu0 0.0
        %692 = vmatpush1.msra.mxu0 0.0
        %693 = vmatprep.subr.mxu0 0.0
        %694 = vmatpush1.msra.mxu0 %v561
        %695 = vmatprep.subr.mxu0 0.0
        %696 = vmatpush2.msra.mxu0 0.0
        %697 = vmatprep.subr.mxu0 0.0
        %698 = vmatpush2.msra.mxu0 0.0
        %699 = vmatprep.subr.mxu0 0.0
        %700 = vmatpush2.msra.mxu0 0.0
        %701 = vmatprep.subr.mxu0 0.0
        %702 = vmatpush2.msra.mxu0 0.0
        %703 = vmatprep.subr.mxu0 0.0
        %704 = vmatpush2.msra.mxu0 0.0
        %705 = vmatprep.subr.mxu0 0.0
        %706 = vmatpush2.msra.mxu0 0.0
        %707 = vmatprep.subr.mxu0 0.0
        %708 = vmatpush2.msra.mxu0 0.0
        %709 = vmatprep.subr.mxu0 0.0
        %710 = vmatpush2.msra.mxu0 0.0
        %711 = vmatprep.subr.mxu0 0.0
        %712 = vmatpush2.msra.mxu0 0.0
        %713 = vmatprep.subr.mxu0 0.0
        %714 = vmatpush2.msra.mxu0 0.0
        %715 = vmatprep.subr.mxu0 0.0
        %716 = vmatpush2.msra.mxu0 0.0
        %717 = vmatprep.subr.mxu0 0.0
        %718 = vmatpush2.msra.mxu0 0.0
        %719 = vmatprep.subr.mxu0 0.0
        %720 = vmatpush2.msra.mxu0 0.0
        %721 = vmatprep.subr.mxu0 0.0
        %722 = vmatpush2.msra.mxu0 0.0
        %723 = vmatprep.subr.mxu0 0.0
        %724 = vmatpush2.msra.mxu0 0.0
        %725 = vmatprep.subr.mxu0 0.0
        %726 = vmatpush2.msra.mxu0 0.0
        %727 = vmatprep.mubr.f32.mxu0 0.0
        %728 = vmatmul.mubr.f32.gmra.mxu0 %v661
        %v729 = vpop.f32.mrf.mxu0
        %v730 = vadd.f32 0.0, %v729
        %v731 = vpop.f32.mrf.mxu0
        %732 = vdwg.mxu0
        %733 = vrot.lane.b32.xlu0 %v405, 112
        %v734 = vpop.permute.xlu0 %733
        %735 = vrot.lane.b32.xlu0 %v483, 112
        %v736 = vpop.permute.xlu0 %735
        %v737 = vsel %vm569, %v734, 0
        %v739 = vsel %vm569, %v736, 0
        %741 = vmatprep.subr.mxu0 0.0
        %742 = vmatpush1.xpose.msra.mxu0 0.0
        %743 = vmatprep.subr.mxu0 0.0
        %744 = vmatpush1.xpose.msra.mxu0 0.0
        %745 = vmatprep.subr.mxu0 0.0
        %746 = vmatpush1.xpose.msra.mxu0 0.0
        %747 = vmatprep.subr.mxu0 0.0
        %748 = vmatpush1.xpose.msra.mxu0 0.0
        %749 = vmatprep.subr.mxu0 0.0
        %750 = vmatpush1.xpose.msra.mxu0 0.0
        %751 = vmatprep.subr.mxu0 0.0
        %752 = vmatpush1.xpose.msra.mxu0 0.0
        %753 = vmatprep.subr.mxu0 0.0
        %754 = vmatpush1.xpose.msra.mxu0 0.0
        %755 = vmatprep.subr.mxu0 0.0
        %756 = vmatpush1.xpose.msra.mxu0 0.0
        %757 = vmatprep.subr.mxu0 0.0
        %758 = vmatpush1.xpose.msra.mxu0 0.0
        %759 = vmatprep.subr.mxu0 0.0
        %760 = vmatpush1.xpose.msra.mxu0 0.0
        %761 = vmatprep.subr.mxu0 0.0
        %762 = vmatpush1.xpose.msra.mxu0 0.0
        %763 = vmatprep.subr.mxu0 0.0
        %764 = vmatpush1.xpose.msra.mxu0 0.0
        %765 = vmatprep.subr.mxu0 0.0
        %766 = vmatpush1.xpose.msra.mxu0 0.0
        %767 = vmatprep.subr.mxu0 0.0
        %768 = vmatpush1.xpose.msra.mxu0 0.0
        %769 = vmatprep.subr.mxu0 0.0
        %770 = vmatpush1.xpose.msra.mxu0 0.0
        %771 = vmatprep.subr.mxu0 0.0
        %772 = vmatpush1.xpose.msra.mxu0 %v739
        %773 = vmatprep.subr.mxu0 0.0
        %774 = vmatpush2.xpose.msra.mxu0 0.0
        %775 = vmatprep.subr.mxu0 0.0
        %776 = vmatpush2.xpose.msra.mxu0 0.0
        %777 = vmatprep.subr.mxu0 0.0
        %778 = vmatpush2.xpose.msra.mxu0 0.0
        %779 = vmatprep.subr.mxu0 0.0
        %780 = vmatpush2.xpose.msra.mxu0 0.0
        %781 = vmatprep.subr.mxu0 0.0
        %782 = vmatpush2.xpose.msra.mxu0 0.0
        %783 = vmatprep.subr.mxu0 0.0
        %784 = vmatpush2.xpose.msra.mxu0 0.0
        %785 = vmatprep.subr.mxu0 0.0
        %786 = vmatpush2.xpose.msra.mxu0 0.0
        %787 = vmatprep.subr.mxu0 0.0
        %788 = vmatpush2.xpose.msra.mxu0 0.0
        %789 = vmatprep.subr.mxu0 0.0
        %790 = vmatpush2.xpose.msra.mxu0 0.0
        %791 = vmatprep.subr.mxu0 0.0
        %792 = vmatpush2.xpose.msra.mxu0 0.0
        %793 = vmatprep.subr.mxu0 0.0
        %794 = vmatpush2.xpose.msra.mxu0 0.0
        %795 = vmatprep.subr.mxu0 0.0
        %796 = vmatpush2.xpose.msra.mxu0 0.0
        %797 = vmatprep.subr.mxu0 0.0
        %798 = vmatpush2.xpose.msra.mxu0 0.0
        %799 = vmatprep.subr.mxu0 0.0
        %800 = vmatpush2.xpose.msra.mxu0 0.0
        %801 = vmatprep.subr.mxu0 0.0
        %802 = vmatpush2.xpose.msra.mxu0 0.0
        %803 = vmatprep.subr.mxu0 0.0
        %804 = vmatpush2.xpose.msra.mxu0 0.0
        %805 = vmatprep.mubr.f32.mxu0 0.0
        %806 = vmatmul.mubr.f32.gmra.mxu0 %v737
        %v807 = vpop.f32.mrf.mxu0
        %v808 = vadd.f32 0.0, %v807
        %v809 = vpop.f32.mrf.mxu0
        %810 = vdwg.mxu0
        %v811 = vmul.f32 %v808, 0.125
        %v812 = vsel %vm568, %v811, -inf
        %v813 = vsel %vm648, %v812, -inf
        %814 = vmax.xlane.f32.xlu0 %v813
        %v815 = vpop.xlane.xlu0 %814
        %v816 = vsub.f32 %v812, %v815
        %v817 = vmul.f32 %v816, 1.442695
        %v818 = vpow.pop %v817
        %v819 = vsel %vm648, %v818, 0.0
        %820 = vadd.xlane.f32.xlu0 %v819
        %v821 = vpop.xlane.xlu0 %820
        %v822 = vrcp.pop %v821
        %v823 = vmul.f32 %v818, %v822
        %825 = vrot.lane.b32.xlu0 %v561, 112
        %v826 = vpop.permute.xlu0 %825
        %v829 = vsel %vm648, %v823, 0
        %831 = vmatprep.subr.mxu0 0.0
        %832 = vmatpush1.msra.mxu0 0.0
        %833 = vmatprep.subr.mxu0 0.0
        %834 = vmatpush1.msra.mxu0 0.0
        %835 = vmatprep.subr.mxu0 0.0
        %836 = vmatpush1.msra.mxu0 0.0
        %837 = vmatprep.subr.mxu0 0.0
        %838 = vmatpush1.msra.mxu0 0.0
        %839 = vmatprep.subr.mxu0 0.0
        %840 = vmatpush1.msra.mxu0 0.0
        %841 = vmatprep.subr.mxu0 0.0
        %842 = vmatpush1.msra.mxu0 0.0
        %843 = vmatprep.subr.mxu0 0.0
        %844 = vmatpush1.msra.mxu0 0.0
        %845 = vmatprep.subr.mxu0 0.0
        %846 = vmatpush1.msra.mxu0 0.0
        %847 = vmatprep.subr.mxu0 0.0
        %848 = vmatpush1.msra.mxu0 0.0
        %849 = vmatprep.subr.mxu0 0.0
        %850 = vmatpush1.msra.mxu0 0.0
        %851 = vmatprep.subr.mxu0 0.0
        %852 = vmatpush1.msra.mxu0 0.0
        %853 = vmatprep.subr.mxu0 0.0
        %854 = vmatpush1.msra.mxu0 0.0
        %855 = vmatprep.subr.mxu0 0.0
        %856 = vmatpush1.msra.mxu0 0.0
        %857 = vmatprep.subr.mxu0 0.0
        %858 = vmatpush1.msra.mxu0 0.0
        %859 = vmatprep.subr.mxu0 0.0
        %860 = vmatpush1.msra.mxu0 0.0
        %861 = vmatprep.subr.mxu0 0.0
        %862 = vmatpush1.msra.mxu0 %v826
        %863 = vmatprep.subr.mxu0 0.0
        %864 = vmatpush2.msra.mxu0 0.0
        %865 = vmatprep.subr.mxu0 0.0
        %866 = vmatpush2.msra.mxu0 0.0
        %867 = vmatprep.subr.mxu0 0.0
        %868 = vmatpush2.msra.mxu0 0.0
        %869 = vmatprep.subr.mxu0 0.0
        %870 = vmatpush2.msra.mxu0 0.0
        %871 = vmatprep.subr.mxu0 0.0
        %872 = vmatpush2.msra.mxu0 0.0
        %873 = vmatprep.subr.mxu0 0.0
        %874 = vmatpush2.msra.mxu0 0.0
        %875 = vmatprep.subr.mxu0 0.0
        %876 = vmatpush2.msra.mxu0 0.0
        %877 = vmatprep.subr.mxu0 0.0
        %878 = vmatpush2.msra.mxu0 0.0
        %879 = vmatprep.subr.mxu0 0.0
        %880 = vmatpush2.msra.mxu0 0.0
        %881 = vmatprep.subr.mxu0 0.0
        %882 = vmatpush2.msra.mxu0 0.0
        %883 = vmatprep.subr.mxu0 0.0
        %884 = vmatpush2.msra.mxu0 0.0
        %885 = vmatprep.subr.mxu0 0.0
        %886 = vmatpush2.msra.mxu0 0.0
        %887 = vmatprep.subr.mxu0 0.0
        %888 = vmatpush2.msra.mxu0 0.0
        %889 = vmatprep.subr.mxu0 0.0
        %890 = vmatpush2.msra.mxu0 0.0
        %891 = vmatprep.subr.mxu0 0.0
        %892 = vmatpush2.msra.mxu0 0.0
        %893 = vmatprep.subr.mxu0 0.0
        %894 = vmatpush2.msra.mxu0 0.0
        %895 = vmatprep.mubr.f32.mxu0 0.0
        %896 = vmatmul.mubr.f32.gmra.mxu0 %v829
        %v897 = vpop.f32.mrf.mxu0
        %v898 = vadd.f32 0.0, %v897
        %v899 = vpop.f32.mrf.mxu0
        %900 = vdwg.mxu0
        %901 = vrot.lane.b32.xlu0 %v405, 96
        %v902 = vpop.permute.xlu0 %901
        %903 = vrot.lane.b32.xlu0 %v483, 96
        %v904 = vpop.permute.xlu0 %903
        %v905 = vsel %vm569, %v902, 0
        %v907 = vsel %vm569, %v904, 0
        %909 = vmatprep.subr.mxu0 0.0
        %910 = vmatpush1.xpose.msra.mxu0 0.0
        %911 = vmatprep.subr.mxu0 0.0
        %912 = vmatpush1.xpose.msra.mxu0 0.0
        %913 = vmatprep.subr.mxu0 0.0
        %914 = vmatpush1.xpose.msra.mxu0 0.0
        %915 = vmatprep.subr.mxu0 0.0
        %916 = vmatpush1.xpose.msra.mxu0 0.0
        %917 = vmatprep.subr.mxu0 0.0
        %918 = vmatpush1.xpose.msra.mxu0 0.0
        %919 = vmatprep.subr.mxu0 0.0
        %920 = vmatpush1.xpose.msra.mxu0 0.0
        %921 = vmatprep.subr.mxu0 0.0
        %922 = vmatpush1.xpose.msra.mxu0 0.0
        %923 = vmatprep.subr.mxu0 0.0
        %924 = vmatpush1.xpose.msra.mxu0 0.0
        %925 = vmatprep.subr.mxu0 0.0
        %926 = vmatpush1.xpose.msra.mxu0 0.0
        %927 = vmatprep.subr.mxu0 0.0
        %928 = vmatpush1.xpose.msra.mxu0 0.0
        %929 = vmatprep.subr.mxu0 0.0
        %930 = vmatpush1.xpose.msra.mxu0 0.0
        %931 = vmatprep.subr.mxu0 0.0
        %932 = vmatpush1.xpose.msra.mxu0 0.0
        %933 = vmatprep.subr.mxu0 0.0
        %934 = vmatpush1.xpose.msra.mxu0 0.0
        %935 = vmatprep.subr.mxu0 0.0
        %936 = vmatpush1.xpose.msra.mxu0 0.0
        %937 = vmatprep.subr.mxu0 0.0
        %938 = vmatpush1.xpose.msra.mxu0 0.0
        %939 = vmatprep.subr.mxu0 0.0
        %940 = vmatpush1.xpose.msra.mxu0 %v907
        %941 = vmatprep.subr.mxu0 0.0
        %942 = vmatpush2.xpose.msra.mxu0 0.0
        %943 = vmatprep.subr.mxu0 0.0
        %944 = vmatpush2.xpose.msra.mxu0 0.0
        %945 = vmatprep.subr.mxu0 0.0
        %946 = vmatpush2.xpose.msra.mxu0 0.0
        %947 = vmatprep.subr.mxu0 0.0
        %948 = vmatpush2.xpose.msra.mxu0 0.0
        %949 = vmatprep.subr.mxu0 0.0
        %950 = vmatpush2.xpose.msra.mxu0 0.0
        %951 = vmatprep.subr.mxu0 0.0
        %952 = vmatpush2.xpose.msra.mxu0 0.0
        %953 = vmatprep.subr.mxu0 0.0
        %954 = vmatpush2.xpose.msra.mxu0 0.0
        %955 = vmatprep.subr.mxu0 0.0
        %956 = vmatpush2.xpose.msra.mxu0 0.0
        %957 = vmatprep.subr.mxu0 0.0
        %958 = vmatpush2.xpose.msra.mxu0 0.0
        %959 = vmatprep.subr.mxu0 0.0
        %960 = vmatpush2.xpose.msra.mxu0 0.0
        %961 = vmatprep.subr.mxu0 0.0
        %962 = vmatpush2.xpose.msra.mxu0 0.0
        %963 = vmatprep.subr.mxu0 0.0
        %964 = vmatpush2.xpose.msra.mxu0 0.0
        %965 = vmatprep.subr.mxu0 0.0
        %966 = vmatpush2.xpose.msra.mxu0 0.0
        %967 = vmatprep.subr.mxu0 0.0
        %968 = vmatpush2.xpose.msra.mxu0 0.0
        %969 = vmatprep.subr.mxu0 0.0
        %970 = vmatpush2.xpose.msra.mxu0 0.0
        %971 = vmatprep.subr.mxu0 0.0
        %972 = vmatpush2.xpose.msra.mxu0 0.0
        %973 = vmatprep.mubr.f32.mxu0 0.0
        %974 = vmatmul.mubr.f32.gmra.mxu0 %v905
        %v975 = vpop.f32.mrf.mxu0
        %v976 = vadd.f32 0.0, %v975
        %v977 = vpop.f32.mrf.mxu0
        %978 = vdwg.mxu0
        %v979 = vmul.f32 %v976, 0.125
        %v980 = vsel %vm568, %v979, -inf
        %v981 = vsel %vm648, %v980, -inf
        %982 = vmax.xlane.f32.xlu0 %v981
        %v983 = vpop.xlane.xlu0 %982
        %v984 = vsub.f32 %v980, %v983
        %v985 = vmul.f32 %v984, 1.442695
        %v986 = vpow.pop %v985
        %v987 = vsel %vm648, %v986, 0.0
        %988 = vadd.xlane.f32.xlu0 %v987
        %v989 = vpop.xlane.xlu0 %988
        %v990 = vrcp.pop %v989
        %v991 = vmul.f32 %v986, %v990
        %992 = vrot.lane.b32.xlu0 %v561, 96
        %v993 = vpop.permute.xlu0 %992
        %v996 = vsel %vm648, %v991, 0
        %998 = vmatprep.subr.mxu0 0.0
        %999 = vmatpush1.msra.mxu0 0.0
        %1000 = vmatprep.subr.mxu0 0.0
        %1001 = vmatpush1.msra.mxu0 0.0
        %1002 = vmatprep.subr.mxu0 0.0
        %1003 = vmatpush1.msra.mxu0 0.0
        %1004 = vmatprep.subr.mxu0 0.0
        %1005 = vmatpush1.msra.mxu0 0.0
        %1006 = vmatprep.subr.mxu0 0.0
        %1007 = vmatpush1.msra.mxu0 0.0
        %1008 = vmatprep.subr.mxu0 0.0
        %1009 = vmatpush1.msra.mxu0 0.0
        %1010 = vmatprep.subr.mxu0 0.0
        %1011 = vmatpush1.msra.mxu0 0.0
        %1012 = vmatprep.subr.mxu0 0.0
        %1013 = vmatpush1.msra.mxu0 0.0
        %1014 = vmatprep.subr.mxu0 0.0
        %1015 = vmatpush1.msra.mxu0 0.0
        %1016 = vmatprep.subr.mxu0 0.0
        %1017 = vmatpush1.msra.mxu0 0.0
        %1018 = vmatprep.subr.mxu0 0.0
        %1019 = vmatpush1.msra.mxu0 0.0
        %1020 = vmatprep.subr.mxu0 0.0
        %1021 = vmatpush1.msra.mxu0 0.0
        %1022 = vmatprep.subr.mxu0 0.0
        %1023 = vmatpush1.msra.mxu0 0.0
        %1024 = vmatprep.subr.mxu0 0.0
        %1025 = vmatpush1.msra.mxu0 0.0
        %1026 = vmatprep.subr.mxu0 0.0
        %1027 = vmatpush1.msra.mxu0 0.0
        %1028 = vmatprep.subr.mxu0 0.0
        %1029 = vmatpush1.msra.mxu0 %v993
        %1030 = vmatprep.subr.mxu0 0.0
        %1031 = vmatpush2.msra.mxu0 0.0
        %1032 = vmatprep.subr.mxu0 0.0
        %1033 = vmatpush2.msra.mxu0 0.0
        %1034 = vmatprep.subr.mxu0 0.0
        %1035 = vmatpush2.msra.mxu0 0.0
        %1036 = vmatprep.subr.mxu0 0.0
        %1037 = vmatpush2.msra.mxu0 0.0
        %1038 = vmatprep.subr.mxu0 0.0
        %1039 = vmatpush2.msra.mxu0 0.0
        %1040 = vmatprep.subr.mxu0 0.0
        %1041 = vmatpush2.msra.mxu0 0.0
        %1042 = vmatprep.subr.mxu0 0.0
        %1043 = vmatpush2.msra.mxu0 0.0
        %1044 = vmatprep.subr.mxu0 0.0
        %1045 = vmatpush2.msra.mxu0 0.0
        %1046 = vmatprep.subr.mxu0 0.0
        %1047 = vmatpush2.msra.mxu0 0.0
        %1048 = vmatprep.subr.mxu0 0.0
        %1049 = vmatpush2.msra.mxu0 0.0
        %1050 = vmatprep.subr.mxu0 0.0
        %1051 = vmatpush2.msra.mxu0 0.0
        %1052 = vmatprep.subr.mxu0 0.0
        %1053 = vmatpush2.msra.mxu0 0.0
        %1054 = vmatprep.subr.mxu0 0.0
        %1055 = vmatpush2.msra.mxu0 0.0
        %1056 = vmatprep.subr.mxu0 0.0
        %1057 = vmatpush2.msra.mxu0 0.0
        %1058 = vmatprep.subr.mxu0 0.0
        %1059 = vmatpush2.msra.mxu0 0.0
        %1060 = vmatprep.subr.mxu0 0.0
        %1061 = vmatpush2.msra.mxu0 0.0
        %1062 = vmatprep.mubr.f32.mxu0 0.0
        %1063 = vmatmul.mubr.f32.gmra.mxu0 %v996
        %v1064 = vpop.f32.mrf.mxu0
        %v1065 = vadd.f32 0.0, %v1064
        %v1066 = vpop.f32.mrf.mxu0
        %1067 = vdwg.mxu0
        %1068 = vrot.lane.b32.xlu0 %v405, 80
        %v1069 = vpop.permute.xlu0 %1068
        %1070 = vrot.lane.b32.xlu0 %v483, 80
        %v1071 = vpop.permute.xlu0 %1070
        %v1072 = vsel %vm569, %v1069, 0
        %v1074 = vsel %vm569, %v1071, 0
        %1076 = vmatprep.subr.mxu0 0.0
        %1077 = vmatpush1.xpose.msra.mxu0 0.0
        %1078 = vmatprep.subr.mxu0 0.0
        %1079 = vmatpush1.xpose.msra.mxu0 0.0
        %1080 = vmatprep.subr.mxu0 0.0
        %1081 = vmatpush1.xpose.msra.mxu0 0.0
        %1082 = vmatprep.subr.mxu0 0.0
        %1083 = vmatpush1.xpose.msra.mxu0 0.0
        %1084 = vmatprep.subr.mxu0 0.0
        %1085 = vmatpush1.xpose.msra.mxu0 0.0
        %1086 = vmatprep.subr.mxu0 0.0
        %1087 = vmatpush1.xpose.msra.mxu0 0.0
        %1088 = vmatprep.subr.mxu0 0.0
        %1089 = vmatpush1.xpose.msra.mxu0 0.0
        %1090 = vmatprep.subr.mxu0 0.0
        %1091 = vmatpush1.xpose.msra.mxu0 0.0
        %1092 = vmatprep.subr.mxu0 0.0
        %1093 = vmatpush1.xpose.msra.mxu0 0.0
        %1094 = vmatprep.subr.mxu0 0.0
        %1095 = vmatpush1.xpose.msra.mxu0 0.0
        %1096 = vmatprep.subr.mxu0 0.0
        %1097 = vmatpush1.xpose.msra.mxu0 0.0
        %1098 = vmatprep.subr.mxu0 0.0
        %1099 = vmatpush1.xpose.msra.mxu0 0.0
        %1100 = vmatprep.subr.mxu0 0.0
        %1101 = vmatpush1.xpose.msra.mxu0 0.0
        %1102 = vmatprep.subr.mxu0 0.0
        %1103 = vmatpush1.xpose.msra.mxu0 0.0
        %1104 = vmatprep.subr.mxu0 0.0
        %1105 = vmatpush1.xpose.msra.mxu0 0.0
        %1106 = vmatprep.subr.mxu0 0.0
        %1107 = vmatpush1.xpose.msra.mxu0 %v1074
        %1108 = vmatprep.subr.mxu0 0.0
        %1109 = vmatpush2.xpose.msra.mxu0 0.0
        %1110 = vmatprep.subr.mxu0 0.0
        %1111 = vmatpush2.xpose.msra.mxu0 0.0
        %1112 = vmatprep.subr.mxu0 0.0
        %1113 = vmatpush2.xpose.msra.mxu0 0.0
        %1114 = vmatprep.subr.mxu0 0.0
        %1115 = vmatpush2.xpose.msra.mxu0 0.0
        %1116 = vmatprep.subr.mxu0 0.0
        %1117 = vmatpush2.xpose.msra.mxu0 0.0
        %1118 = vmatprep.subr.mxu0 0.0
        %1119 = vmatpush2.xpose.msra.mxu0 0.0
        %1120 = vmatprep.subr.mxu0 0.0
        %1121 = vmatpush2.xpose.msra.mxu0 0.0
        %1122 = vmatprep.subr.mxu0 0.0
        %1123 = vmatpush2.xpose.msra.mxu0 0.0
        %1124 = vmatprep.subr.mxu0 0.0
        %1125 = vmatpush2.xpose.msra.mxu0 0.0
        %1126 = vmatprep.subr.mxu0 0.0
        %1127 = vmatpush2.xpose.msra.mxu0 0.0
        %1128 = vmatprep.subr.mxu0 0.0
        %1129 = vmatpush2.xpose.msra.mxu0 0.0
        %1130 = vmatprep.subr.mxu0 0.0
        %1131 = vmatpush2.xpose.msra.mxu0 0.0
        %1132 = vmatprep.subr.mxu0 0.0
        %1133 = vmatpush2.xpose.msra.mxu0 0.0
        %1134 = vmatprep.subr.mxu0 0.0
        %1135 = vmatpush2.xpose.msra.mxu0 0.0
        %1136 = vmatprep.subr.mxu0 0.0
        %1137 = vmatpush2.xpose.msra.mxu0 0.0
        %1138 = vmatprep.subr.mxu0 0.0
        %1139 = vmatpush2.xpose.msra.mxu0 0.0
        %1140 = vmatprep.mubr.f32.mxu0 0.0
        %1141 = vmatmul.mubr.f32.gmra.mxu0 %v1072
        %v1142 = vpop.f32.mrf.mxu0
        %v1143 = vadd.f32 0.0, %v1142
        %v1144 = vpop.f32.mrf.mxu0
        %1145 = vdwg.mxu0
        %v1146 = vmul.f32 %v1143, 0.125
        %v1147 = vsel %vm568, %v1146, -inf
        %v1148 = vsel %vm648, %v1147, -inf
        %1149 = vmax.xlane.f32.xlu0 %v1148
        %v1150 = vpop.xlane.xlu0 %1149
        %v1151 = vsub.f32 %v1147, %v1150
        %v1152 = vmul.f32 %v1151, 1.442695
        %v1153 = vpow.pop %v1152
        %v1154 = vsel %vm648, %v1153, 0.0
        %1155 = vadd.xlane.f32.xlu0 %v1154
        %v1156 = vpop.xlane.xlu0 %1155
        %v1157 = vrcp.pop %v1156
        %v1158 = vmul.f32 %v1153, %v1157
        %1159 = vrot.lane.b32.xlu0 %v561, 80
        %v1160 = vpop.permute.xlu0 %1159
        %v1163 = vsel %vm648, %v1158, 0
        %1165 = vmatprep.subr.mxu0 0.0
        %1166 = vmatpush1.msra.mxu0 0.0
        %1167 = vmatprep.subr.mxu0 0.0
        %1168 = vmatpush1.msra.mxu0 0.0
        %1169 = vmatprep.subr.mxu0 0.0
        %1170 = vmatpush1.msra.mxu0 0.0
        %1171 = vmatprep.subr.mxu0 0.0
        %1172 = vmatpush1.msra.mxu0 0.0
        %1173 = vmatprep.subr.mxu0 0.0
        %1174 = vmatpush1.msra.mxu0 0.0
        %1175 = vmatprep.subr.mxu0 0.0
        %1176 = vmatpush1.msra.mxu0 0.0
        %1177 = vmatprep.subr.mxu0 0.0
        %1178 = vmatpush1.msra.mxu0 0.0
        %1179 = vmatprep.subr.mxu0 0.0
        %1180 = vmatpush1.msra.mxu0 0.0
        %1181 = vmatprep.subr.mxu0 0.0
        %1182 = vmatpush1.msra.mxu0 0.0
        %1183 = vmatprep.subr.mxu0 0.0
        %1184 = vmatpush1.msra.mxu0 0.0
        %1185 = vmatprep.subr.mxu0 0.0
        %1186 = vmatpush1.msra.mxu0 0.0
        %1187 = vmatprep.subr.mxu0 0.0
        %1188 = vmatpush1.msra.mxu0 0.0
        %1189 = vmatprep.subr.mxu0 0.0
        %1190 = vmatpush1.msra.mxu0 0.0
        %1191 = vmatprep.subr.mxu0 0.0
        %1192 = vmatpush1.msra.mxu0 0.0
        %1193 = vmatprep.subr.mxu0 0.0
        %1194 = vmatpush1.msra.mxu0 0.0
        %1195 = vmatprep.subr.mxu0 0.0
        %1196 = vmatpush1.msra.mxu0 %v1160
        %1197 = vmatprep.subr.mxu0 0.0
        %1198 = vmatpush2.msra.mxu0 0.0
        %1199 = vmatprep.subr.mxu0 0.0
        %1200 = vmatpush2.msra.mxu0 0.0
        %1201 = vmatprep.subr.mxu0 0.0
        %1202 = vmatpush2.msra.mxu0 0.0
        %1203 = vmatprep.subr.mxu0 0.0
        %1204 = vmatpush2.msra.mxu0 0.0
        %1205 = vmatprep.subr.mxu0 0.0
        %1206 = vmatpush2.msra.mxu0 0.0
        %1207 = vmatprep.subr.mxu0 0.0
        %1208 = vmatpush2.msra.mxu0 0.0
        %1209 = vmatprep.subr.mxu0 0.0
        %1210 = vmatpush2.msra.mxu0 0.0
        %1211 = vmatprep.subr.mxu0 0.0
        %1212 = vmatpush2.msra.mxu0 0.0
        %1213 = vmatprep.subr.mxu0 0.0
        %1214 = vmatpush2.msra.mxu0 0.0
        %1215 = vmatprep.subr.mxu0 0.0
        %1216 = vmatpush2.msra.mxu0 0.0
        %1217 = vmatprep.subr.mxu0 0.0
        %1218 = vmatpush2.msra.mxu0 0.0
        %1219 = vmatprep.subr.mxu0 0.0
        %1220 = vmatpush2.msra.mxu0 0.0
        %1221 = vmatprep.subr.mxu0 0.0
        %1222 = vmatpush2.msra.mxu0 0.0
        %1223 = vmatprep.subr.mxu0 0.0
        %1224 = vmatpush2.msra.mxu0 0.0
        %1225 = vmatprep.subr.mxu0 0.0
        %1226 = vmatpush2.msra.mxu0 0.0
        %1227 = vmatprep.subr.mxu0 0.0
        %1228 = vmatpush2.msra.mxu0 0.0
        %1229 = vmatprep.mubr.f32.mxu0 0.0
        %1230 = vmatmul.mubr.f32.gmra.mxu0 %v1163
        %v1231 = vpop.f32.mrf.mxu0
        %v1232 = vadd.f32 0.0, %v1231
        %v1233 = vpop.f32.mrf.mxu0
        %1234 = vdwg.mxu0
        %1236 = vrot.lane.b32.xlu0 %v898, 16
        %v1237 = vpop.permute.xlu0 %1236
        %1240 = vrot.lane.b32.xlu0 %v1065, 32
        %v1241 = vpop.permute.xlu0 %1240
        %1244 = vrot.lane.b32.xlu0 %v1232, 48
        %v1245 = vpop.permute.xlu0 %1244
        %v1247 = vsel %vm569, %v730, %v1237
        %vm1248 = vcmask 261120
        %v1249 = vsel %vm1248, %v1247, %v1241
        %vm1250 = vcmask 392192
        %v1251 = vsel %vm1250, %v1249, %v1245
        %v1252 = vld [vmem:[#allocation10] sm:$0xff]
        %v1253 = vld [vmem:[#allocation10 + $0x8] sm:$0xff]
        %v1254 = vld [vmem:[#allocation10 + $0x10] sm:$0xff]
        %v1255 = vld [vmem:[#allocation10 + $0x18] sm:$0xff]
        %v1256 = vld [vmem:[#allocation10 + $0x20] sm:$0xff]
        %v1257 = vld [vmem:[#allocation10 + $0x28] sm:$0xff]
        %v1258 = vld [vmem:[#allocation10 + $0x30] sm:$0xff]
        %v1259 = vld [vmem:[#allocation10 + $0x38] sm:$0xff]
        %v1260 = vld [vmem:[%s5] sm:$0x1]
        %v1262 = vlaneseq
        %v1263 = vshrl.u32 %v1262, 7
        %v1264 = vsub.s32 0, %v1263
        %v1265 = vrot.slane %v1260, %v1264
        %v1268 = vsel %vm334, %v1251, 0
        %1270 = vmatprep.subr.mxu0 0.0
        %1271 = vmatpush1.msra.mxu0 0.0
        %1272 = vmatprep.subr.mxu0 0.0
        %1273 = vmatpush1.msra.mxu0 0.0
        %1274 = vmatprep.subr.mxu0 0.0
        %1275 = vmatpush1.msra.mxu0 0.0
        %1276 = vmatprep.subr.mxu0 0.0
        %1277 = vmatpush1.msra.mxu0 0.0
        %1278 = vmatprep.subr.mxu0 0.0
        %1279 = vmatpush1.msra.mxu0 0.0
        %1280 = vmatprep.subr.mxu0 0.0
        %1281 = vmatpush1.msra.mxu0 0.0
        %1282 = vmatprep.subr.mxu0 0.0
        %1283 = vmatpush1.msra.mxu0 0.0
        %1284 = vmatprep.subr.mxu0 0.0
        %1285 = vmatpush1.msra.mxu0 0.0
        %1286 = vmatprep.subr.mxu0 0.0
        %1287 = vmatpush1.msra.mxu0 %v1259
        %1288 = vmatprep.subr.mxu0 0.0
        %1289 = vmatpush1.msra.mxu0 %v1258
        %1290 = vmatprep.subr.mxu0 0.0
        %1291 = vmatpush1.msra.mxu0 %v1257
        %1292 = vmatprep.subr.mxu0 0.0
        %1293 = vmatpush1.msra.mxu0 %v1256
        %1294 = vmatprep.subr.mxu0 0.0
        %1295 = vmatpush1.msra.mxu0 %v1255
        %1296 = vmatprep.subr.mxu0 0.0
        %1297 = vmatpush1.msra.mxu0 %v1254
        %1298 = vmatprep.subr.mxu0 0.0
        %1299 = vmatpush1.msra.mxu0 %v1253
        %1300 = vmatprep.subr.mxu0 0.0
        %1301 = vmatpush1.msra.mxu0 %v1252
        %1302 = vmatprep.subr.mxu0 0.0
        %1303 = vmatpush2.msra.mxu0 0.0
        %1304 = vmatprep.subr.mxu0 0.0
        %1305 = vmatpush2.msra.mxu0 0.0
        %1306 = vmatprep.subr.mxu0 0.0
        %1307 = vmatpush2.msra.mxu0 0.0
        %1308 = vmatprep.subr.mxu0 0.0
        %1309 = vmatpush2.msra.mxu0 0.0
        %1310 = vmatprep.subr.mxu0 0.0
        %1311 = vmatpush2.msra.mxu0 0.0
        %1312 = vmatprep.subr.mxu0 0.0
        %1313 = vmatpush2.msra.mxu0 0.0
        %1314 = vmatprep.subr.mxu0 0.0
        %1315 = vmatpush2.msra.mxu0 0.0
        %1316 = vmatprep.subr.mxu0 0.0
        %1317 = vmatpush2.msra.mxu0 0.0
        %1318 = vmatprep.subr.mxu0 0.0
        %1319 = vmatpush2.msra.mxu0 0.0
        %1320 = vmatprep.subr.mxu0 0.0
        %1321 = vmatpush2.msra.mxu0 0.0
        %1322 = vmatprep.subr.mxu0 0.0
        %1323 = vmatpush2.msra.mxu0 0.0
        %1324 = vmatprep.subr.mxu0 0.0
        %1325 = vmatpush2.msra.mxu0 0.0
        %1326 = vmatprep.subr.mxu0 0.0
        %1327 = vmatpush2.msra.mxu0 0.0
        %1328 = vmatprep.subr.mxu0 0.0
        %1329 = vmatpush2.msra.mxu0 0.0
        %1330 = vmatprep.subr.mxu0 0.0
        %1331 = vmatpush2.msra.mxu0 0.0
        %1332 = vmatprep.subr.mxu0 0.0
        %1333 = vmatpush2.msra.mxu0 0.0
        %1334 = vmatprep.mubr.f32.mxu0 0.0
        %1335 = vmatmul.mubr.f32.gmra.mxu0 %v1268
        %v1336 = vpop.f32.mrf.mxu0
        %v1337 = vadd.f32 %v1265, %v1336
        %v1338 = vpop.f32.mrf.mxu0
        %1339 = vdwg.mxu0
        %1340 = vst.msk [vmem:[%s324] sm:$0xff] %vm334, %v1337
        %s1341 = sand.u32 %s164, 1
        %s1342 = scalar_lea.sflag [#allocation4], %s1341
        %s1343 = sand.u32 %s164, 1
        %s1344 = smul.addr %s1343, 8
        %s1345 = scalar_lea.vmem [#allocation11], %s1344
        // Predicated region
        $region65: #{tpu_custom_call.1} parent=43 // pred_check
          %p1346 = pneg %p174
        $region66: #{tpu_custom_call.1} parent=43 // pred_check_branch
          %1348 = sbr.rel (%p1346) target = $region68
        $region67: #{tpu_custom_call.1} parent=43 // pred_region
          %s1350 = ssub.s32 128, 128
          %1351 = vsyncadd %s1342, %s1350
          %s1352 = smul.addr %s25, 128
          %s1353 = scalar_lea.hbm %s6, %s1352
          %s1355 = sshll.u32 %s1345, 4
          %s1356 = int_to_ptr.vmem [resolvable:$true] %s1355
          %1358 = dma.vmem_to_hbm [thread:$0]  %s1356, 128, %s1353, %s1342
        $region68: #{tpu_custom_call.1} parent=43 // pred_fallthru
          _
      $region44: #{tpu_custom_call.1} parent=5 // pred_fallthru
        _
      %p1359 = scmp.le.s32.totalorder 2, %s20
      // Predicated region
      $region69: #{tpu_custom_call.1} parent=5 // pred_check
        %p1360 = pneg %p1359
      $region70: #{tpu_custom_call.1} parent=5 // pred_check_branch
        %1362 = sbr.rel (%p1360) target = $region72
      $region71: #{tpu_custom_call.1} parent=5 // pred_region
        %s1363 = ssub.s32 %s20, 2
        // Predicated region
        $region73: #{tpu_custom_call.1} parent=71 // pred_check
          %p1364 = pneg %p180
        $region74: #{tpu_custom_call.1} parent=71 // pred_check_branch
          %1366 = sbr.rel (%p1364) target = $region76
        $region75: #{tpu_custom_call.1} parent=71 // pred_region
          %s1367 = sand.u32 %s165, 1
          %s1368 = scalar_lea.sflag [#allocation4], %s1367
          %s1369 = sand.u32 %s165, 1
          %s1370 = smul.addr %s1369, 8
          %s1371 = scalar_lea.vmem [#allocation11], %s1370
          %1372 = dma.done %s1368, 128
        $region76: #{tpu_custom_call.1} parent=71 // pred_fallthru
          _
      $region72: #{tpu_custom_call.1} parent=5 // pred_fallthru
        _
    $region6: #{tpu_custom_call.1} parent=1 // loop_footer
      %s24 = sadd.s32 1, %s20
    $region7: #{tpu_custom_call.1} parent=1 // loop_footer_branch
      %19 = sbr.rel target = $region3
    $region8: #{tpu_custom_call.1} parent=1 // loop_exit
      _
    %1373 = vsyncpa [#allocation3], 1
    %s1374 = scalar_lea.sflag [#allocation3], 1
    %1375 = vsyncpa %s1374, 1
    %1376 = vsyncpa [#allocation6], 1
    %1377 = vsyncpa [#allocation9], 1
    %1378 = vsyncpa [#allocation4], 1
    %s1379 = scalar_lea.sflag [#allocation4], 1
    %1380 = vsyncpa %s1379, 1

</llo_original>
